<compile_context>
chip_gen: v6e
topology: v6e:2x2x1
jax: 0.10.0
libtpu: 0.0.40
codegen_flags: <defaults>
</compile_context>

<pallas_src>
import numpy as np
import jax
import jax.numpy as jnp
from jax import lax
from jax.experimental import pallas as pl
from jax.experimental.pallas import tpu as pltpu

# ---------------------------------------------------------------------------
# Config: mirrors SimpleUpsamplingBlock(...) defaults at small synthetic sizes.
# ---------------------------------------------------------------------------
N = 2             # batch
HIN, WIN = 8, 8   # spatial size of `x` before upsampling
CX = 2            # channels of `x`
CF = 2            # channels of `feature`
CIN = CX + CF     # == x_in_shape (channels seen by the first refine conv)
F = 32            # refine_convs_filters (module default is 64; 32 keeps it small)
K = 3             # refine_convs_kernel_size
UP = 2            # upsampling_stride
HOUT, WOUT = HIN * UP, WIN * UP
NHW = N * HOUT * WOUT          # flattened (batch, spatial) axis -> lanes (512)
EPS = 1e-5                     # BatchNorm2d eps; training-mode (batch) stats.


# ---------------------------------------------------------------------------
# Host-side constants (built once with numpy; all shapes are static).
# ---------------------------------------------------------------------------
def _bilinear_taps(n_in: int, scale: int):
    """Static (i0, i1, w0, w1) taps for bilinear x`scale`, align_corners=False."""
    taps = []
    for o in range(n_in * scale):
        src = max(0.0, (o + 0.5) / scale - 0.5)   # PyTorch clamps negative coords
        i0 = int(src)
        i1 = min(i0 + 1, n_in - 1)
        frac = src - i0
        taps.append((i0, i1, 1.0 - frac, frac))
    return taps


def _interp_matrix(n_in: int, scale: int) -> np.ndarray:
    """(n_out, n_in) bilinear upsampling matrix."""
    m = np.zeros((n_in * scale, n_in), np.float32)
    for o, (i0, i1, w0, w1) in enumerate(_bilinear_taps(n_in, scale)):
        m[o, i0] += w0
        m[o, i1] += w1
    return m


def _build_upsample_matrix() -> np.ndarray:
    """(N*HIN*WIN, N*HOUT*WOUT): flattened-lane bilinear x2 for the whole batch."""
    uh = _interp_matrix(HIN, UP)                       # (HOUT, HIN)
    uw = _interp_matrix(WIN, UP)                       # (WOUT, WIN)
    blk = np.kron(uh.T, uw.T)                          # (HIN*WIN, HOUT*WOUT)
    return np.kron(np.eye(N, dtype=np.float32), blk)   # block-diag over batch


def _build_tap_masks() -> np.ndarray:
    """(K*K, NHW) 0/1 masks: valid source pixel for each conv tap ('same' pad)."""
    lane = np.arange(NHW)
    h = (lane // WOUT) % HOUT
    w = lane % WOUT
    m = np.zeros((K * K, NHW), np.float32)
    for t in range(K * K):
        dy, dx = t // K - 1, t % K - 1
        ok = (h + dy >= 0) & (h + dy < HOUT) & (w + dx >= 0) & (w + dx < WOUT)
        m[t] = ok.astype(np.float32)
    return m


_U_MAT = _build_upsample_matrix()          # (128, 512)
_TAP_MASKS = _build_tap_masks()            # (9, 512)


# ---------------------------------------------------------------------------
# Pallas kernel: whole forward pass in one invocation (arrays are tiny -> VMEM)
# ---------------------------------------------------------------------------
def _shift_lanes(a, s):
    """b[:, l] = a[:, l + s], zero-filled where l + s falls outside [0, L)."""
    if s == 0:
        return a
    c, l = a.shape
    z = jnp.zeros((c, abs(s)), a.dtype)
    if s > 0:
        return jnp.concatenate([a[:, s:], z], axis=1)
    return jnp.concatenate([z, a[:, :l + s]], axis=1)


def _fill_im2col(patch_ref, slab, masks):
    """Pack 9 shifted+masked copies of a (Cin, NHW) slab into (K*K*Cin, NHW) scratch."""
    cin = slab.shape[0]
    for t in range(K * K):
        dy, dx = t // K - 1, t % K - 1
        s = dy * WOUT + dx                      # lane offset of the source pixel
        sh = _shift_lanes(slab, s)
        if s != 0:
            sh = sh * masks[t:t + 1, :]         # zero the 'same'-padding halo
        patch_ref[t * cin:(t + 1) * cin, :] = sh


def _bn_relu(a, gamma, beta):
    """Training-mode BatchNorm2d (biased batch stats over lanes) + ReLU."""
    inv = 1.0 / a.shape[1]
    mean = jnp.sum(a, axis=1, keepdims=True) * inv
    var = jnp.sum(a * a, axis=1, keepdims=True) * inv - mean * mean
    y = (a - mean) * lax.rsqrt(var + EPS) * gamma + beta
    return jnp.maximum(y, 0.0)


def _block_kernel(xs_ref, fs_ref, u_ref, m_ref,
                  w1_ref, g1_ref, be1_ref,
                  w2_ref, g2_ref, be2_ref,
                  o_ref, p1_ref, p2_ref):
    f32 = jnp.float32
    masks = m_ref[...]                                               # (9, NHW)

    # ---- bilinear x2 upsample + channel concat in one shot -------------------
    # xs is zero-padded to CIN rows (x channels first), fs is zero-padded to CIN
    # rows (feature channels last): the concat is just the add below.
    slab = jnp.dot(xs_ref[...], u_ref[...],
                   preferred_element_type=f32) + fs_ref[...]         # (CIN, NHW)

    # ---- conv1 (bias cancels in BN) -> BN -> ReLU -----------------------------
    _fill_im2col(p1_ref, slab, masks)                                # (K*K*CIN, NHW)
    c1 = jnp.dot(w1_ref[...], p1_ref[...], preferred_element_type=f32)
    a1 = _bn_relu(c1, g1_ref[...], be1_ref[...])                     # (F, NHW)

    # ---- conv2 (bias cancels in BN) -> BN -> ReLU, whole-slab unmasked store --
    _fill_im2col(p2_ref, a1, masks)                                  # (K*K*F, NHW)
    c2 = jnp.dot(w2_ref[...], p2_ref[...], preferred_element_type=f32)
    o_ref[...] = _bn_relu(c2, g2_ref[...], be2_ref[...])


# ---------------------------------------------------------------------------
# Wrapper: NCHW at the API boundary (PyTorch convention), (C, N*H*W) in-kernel.
# ---------------------------------------------------------------------------
@jax.jit
def simple_upsampling_block(x_nchw, feat_nchw, params):
    # NCHW -> channel-major (C, N*H*W); zero-pad channel rows so the channel
    # concat inside the kernel is a plain add (layout plumbing stays in XLA).
    xs = jnp.transpose(x_nchw, (1, 0, 2, 3)).reshape(CX, N * HIN * WIN)
    xs = jnp.zeros((CIN, N * HIN * WIN), jnp.float32).at[:CX].set(xs.astype(jnp.float32))
    fs = jnp.transpose(feat_nchw, (1, 0, 2, 3)).reshape(CF, NHW)
    fs = jnp.zeros((CIN, NHW), jnp.float32).at[CX:].set(fs.astype(jnp.float32))

    u = jnp.asarray(_U_MAT)          # (N*HIN*WIN, NHW) bilinear upsample matrix
    m = jnp.asarray(_TAP_MASKS)      # (9, NHW) conv boundary masks

    # Torch conv weights (F, Cin, K, K) -> (F, K*K*Cin), column = (ky*K+kx)*Cin + c,
    # matching the im2col scratch row order.
    w1 = jnp.transpose(params["w1"], (0, 2, 3, 1)).reshape(F, K * K * CIN)
    w2 = jnp.transpose(params["w2"], (0, 2, 3, 1)).reshape(F, K * K * F)
    g1 = params["g1"].reshape(F, 1)
    be1 = params["be1"].reshape(F, 1)
    g2 = params["g2"].reshape(F, 1)
    be2 = params["be2"].reshape(F, 1)
    # NOTE: params["b1"] / params["b2"] (conv biases) are not passed to the
    # kernel: adding a per-channel constant right before training-mode
    # BatchNorm cancels exactly against the batch-mean subtraction.

    vmem = pl.BlockSpec(memory_space=pltpu.MemorySpace.VMEM)
    ins = (xs, fs, u, m, w1, g1, be1, w2, g2, be2)

    out = pl.pallas_call(
        _block_kernel,
        out_shape=jax.ShapeDtypeStruct((F, NHW), jnp.float32),  # lane-dense (32, 512)
        in_specs=[vmem] * len(ins),
        out_specs=vmem,
        scratch_shapes=[pltpu.VMEM((K * K * CIN, NHW), jnp.float32),   # conv1 im2col
                        pltpu.VMEM((K * K * F, NHW), jnp.float32)],    # conv2 im2col
    )(*ins)

    # (F, N*H*W) -> (N, F, H, W) NCHW (layout plumbing stays in the XLA wrapper).
    return jnp.transpose(out.reshape(F, N, HOUT, WOUT), (1, 0, 2, 3))


if __name__ == "__main__":
    key = jax.random.PRNGKey(0)
    kx, kf, kw1, kb1, kw2, kb2 = jax.random.split(key, 6)

    # PyTorch-convention NCHW inputs.
    x = jax.random.normal(kx, (N, CX, HIN, WIN), jnp.float32)
    feature = jax.random.normal(kf, (N, CF, HOUT, WOUT), jnp.float32)

    # Deterministic synthetic parameters in PyTorch layouts.
    bound1 = 1.0 / (CIN * K * K) ** 0.5
    bound2 = 1.0 / (F * K * K) ** 0.5
    params = dict(
        w1=jax.random.uniform(kw1, (F, CIN, K, K), jnp.float32, -bound1, bound1),
        b1=jax.random.uniform(kb1, (F,), jnp.float32, -bound1, bound1),  # cancels in BN
        g1=jnp.ones((F,), jnp.float32),    # BatchNorm2d default weight
        be1=jnp.zeros((F,), jnp.float32),  # BatchNorm2d default bias
        w2=jax.random.uniform(kw2, (F, F, K, K), jnp.float32, -bound2, bound2),
        b2=jax.random.uniform(kb2, (F,), jnp.float32, -bound2, bound2),  # cancels in BN
        g2=jnp.ones((F,), jnp.float32),
        be2=jnp.zeros((F,), jnp.float32),
    )

    out = simple_upsampling_block(x, feature, params)
    jax.block_until_ready(out)
    assert out.shape == (N, F, HOUT, WOUT), out.shape
    print("KERNEL_OK")
</pallas_src>

<mosaic_0001>
module attributes {stable_mosaic.version = 11 : i64} {
  func.func @_block_kernel(%arg0: memref<4x128xf32, #tpu.memory_space<vmem>>, %arg1: memref<4x512xf32, #tpu.memory_space<vmem>>, %arg2: memref<128x512xf32, #tpu.memory_space<vmem>>, %arg3: memref<9x512xf32, #tpu.memory_space<vmem>>, %arg4: memref<32x36xf32, #tpu.memory_space<vmem>>, %arg5: memref<32x1xf32, #tpu.memory_space<vmem>>, %arg6: memref<32x1xf32, #tpu.memory_space<vmem>>, %arg7: memref<32x288xf32, #tpu.memory_space<vmem>>, %arg8: memref<32x1xf32, #tpu.memory_space<vmem>>, %arg9: memref<32x1xf32, #tpu.memory_space<vmem>>, %arg10: memref<32x512xf32, #tpu.memory_space<vmem>>, %arg11: memref<36x512xf32, #tpu.memory_space<vmem>>, %arg12: memref<288x512xf32, #tpu.memory_space<vmem>>) attributes {dimension_semantics = [], scalar_prefetch = 0 : i64, scratch_operands = 2 : i64, tpu.core_type = #tpu.core_type<tc>} {
    %c0 = arith.constant 0 : index
    %c0_0 = arith.constant 0 : index
    %0 = vector.load %arg3[%c0, %c0_0] : memref<9x512xf32, #tpu.memory_space<vmem>>, vector<9x512xf32>
    %c0_1 = arith.constant 0 : index
    %c0_2 = arith.constant 0 : index
    %1 = vector.load %arg0[%c0_1, %c0_2] : memref<4x128xf32, #tpu.memory_space<vmem>>, vector<4x128xf32>
    %c0_3 = arith.constant 0 : index
    %c0_4 = arith.constant 0 : index
    %2 = vector.load %arg2[%c0_3, %c0_4] : memref<128x512xf32, #tpu.memory_space<vmem>>, vector<128x512xf32>
    %cst = arith.constant dense<0.000000e+00> : vector<4x512xf32>
    %3 = tpu.matmul %1, %2, %cst {dimension_numbers = #tpu.dot_dimension_numbers<[1], [0], [0], [1], [0, 0, 1, 1], [], []>} : vector<4x128xf32>, vector<128x512xf32>, vector<4x512xf32> -> vector<4x512xf32>
    %c0_5 = arith.constant 0 : index
    %c0_6 = arith.constant 0 : index
    %4 = vector.load %arg1[%c0_5, %c0_6] : memref<4x512xf32, #tpu.memory_space<vmem>>, vector<4x512xf32>
    %5 = arith.addf %3, %4 : vector<4x512xf32>
    %cst_7 = arith.constant 0.000000e+00 : f32
    %6 = vector.broadcast %cst_7 : f32 to vector<4x17xf32>
    %7 = vector.extract_strided_slice %5 {offsets = [0, 0], sizes = [4, 495], strides = [1, 1]} : vector<4x512xf32> to vector<4x495xf32>
    %8 = tpu.concatenate %6, %7 in 1 : vector<4x17xf32>, vector<4x495xf32> -> vector<4x512xf32>
    %9 = vector.extract_strided_slice %0 {offsets = [0, 0], sizes = [1, 512], strides = [1, 1]} : vector<9x512xf32> to vector<1x512xf32>
    %10 = vector.broadcast %9 : vector<1x512xf32> to vector<4x512xf32>
    %11 = arith.mulf %8, %10 : vector<4x512xf32>
    %c0_8 = arith.constant 0 : index
    %c0_9 = arith.constant 0 : index
    %12 = vector.load %arg11[%c0_8, %c0_9] : memref<36x512xf32, #tpu.memory_space<vmem>>, vector<4x512xf32>
    tpu.vector_store %arg11[%c0_8, %c0_9], %11 {strides = array<i32>} : memref<36x512xf32, #tpu.memory_space<vmem>>, vector<4x512xf32>,
    %cst_10 = arith.constant 0.000000e+00 : f32
    %13 = vector.broadcast %cst_10 : f32 to vector<4x16xf32>
    %14 = vector.extract_strided_slice %5 {offsets = [0, 0], sizes = [4, 496], strides = [1, 1]} : vector<4x512xf32> to vector<4x496xf32>
    %15 = tpu.concatenate %13, %14 in 1 : vector<4x16xf32>, vector<4x496xf32> -> vector<4x512xf32>
    %16 = vector.extract_strided_slice %0 {offsets = [1, 0], sizes = [1, 512], strides = [1, 1]} : vector<9x512xf32> to vector<1x512xf32>
    %17 = vector.broadcast %16 : vector<1x512xf32> to vector<4x512xf32>
    %18 = arith.mulf %15, %17 : vector<4x512xf32>
    %c4 = arith.constant 4 : index
    %c0_11 = arith.constant 0 : index
    %19 = vector.load %arg11[%c4, %c0_11] : memref<36x512xf32, #tpu.memory_space<vmem>>, vector<4x512xf32>
    tpu.vector_store %arg11[%c4, %c0_11], %18 {strides = array<i32>} : memref<36x512xf32, #tpu.memory_space<vmem>>, vector<4x512xf32>,
    %cst_12 = arith.constant 0.000000e+00 : f32
    %20 = vector.broadcast %cst_12 : f32 to vector<4x15xf32>
    %21 = vector.extract_strided_slice %5 {offsets = [0, 0], sizes = [4, 497], strides = [1, 1]} : vector<4x512xf32> to vector<4x497xf32>
    %22 = tpu.concatenate %20, %21 in 1 : vector<4x15xf32>, vector<4x497xf32> -> vector<4x512xf32>
    %23 = vector.extract_strided_slice %0 {offsets = [2, 0], sizes = [1, 512], strides = [1, 1]} : vector<9x512xf32> to vector<1x512xf32>
    %24 = vector.broadcast %23 : vector<1x512xf32> to vector<4x512xf32>
    %25 = arith.mulf %22, %24 : vector<4x512xf32>
    %c8 = arith.constant 8 : index
    %c0_13 = arith.constant 0 : index
    %26 = vector.load %arg11[%c8, %c0_13] : memref<36x512xf32, #tpu.memory_space<vmem>>, vector<4x512xf32>
    tpu.vector_store %arg11[%c8, %c0_13], %25 {strides = array<i32>} : memref<36x512xf32, #tpu.memory_space<vmem>>, vector<4x512xf32>,
    %cst_14 = arith.constant 0.000000e+00 : f32
    %27 = vector.broadcast %cst_14 : f32 to vector<4x1xf32>
    %28 = vector.extract_strided_slice %5 {offsets = [0, 0], sizes = [4, 511], strides = [1, 1]} : vector<4x512xf32> to vector<4x511xf32>
    %29 = tpu.concatenate %27, %28 in 1 : vector<4x1xf32>, vector<4x511xf32> -> vector<4x512xf32>
    %30 = vector.extract_strided_slice %0 {offsets = [3, 0], sizes = [1, 512], strides = [1, 1]} : vector<9x512xf32> to vector<1x512xf32>
    %31 = vector.broadcast %30 : vector<1x512xf32> to vector<4x512xf32>
    %32 = arith.mulf %29, %31 : vector<4x512xf32>
    %c12 = arith.constant 12 : index
    %c0_15 = arith.constant 0 : index
    %33 = vector.load %arg11[%c12, %c0_15] : memref<36x512xf32, #tpu.memory_space<vmem>>, vector<4x512xf32>
    tpu.vector_store %arg11[%c12, %c0_15], %32 {strides = array<i32>} : memref<36x512xf32, #tpu.memory_space<vmem>>, vector<4x512xf32>,
    %c16 = arith.constant 16 : index
    %c0_16 = arith.constant 0 : index
    %34 = vector.load %arg11[%c16, %c0_16] : memref<36x512xf32, #tpu.memory_space<vmem>>, vector<4x512xf32>
    tpu.vector_store %arg11[%c16, %c0_16], %5 {strides = array<i32>} : memref<36x512xf32, #tpu.memory_space<vmem>>, vector<4x512xf32>,
    %cst_17 = arith.constant 0.000000e+00 : f32
    %35 = vector.broadcast %cst_17 : f32 to vector<4x1xf32>
    %36 = vector.extract_strided_slice %5 {offsets = [0, 1], sizes = [4, 511], strides = [1, 1]} : vector<4x512xf32> to vector<4x511xf32>
    %37 = tpu.concatenate %36, %35 in 1 : vector<4x511xf32>, vector<4x1xf32> -> vector<4x512xf32>
    %38 = vector.extract_strided_slice %0 {offsets = [5, 0], sizes = [1, 512], strides = [1, 1]} : vector<9x512xf32> to vector<1x512xf32>
    %39 = vector.broadcast %38 : vector<1x512xf32> to vector<4x512xf32>
    %40 = arith.mulf %37, %39 : vector<4x512xf32>
    %c20 = arith.constant 20 : index
    %c0_18 = arith.constant 0 : index
    %41 = vector.load %arg11[%c20, %c0_18] : memref<36x512xf32, #tpu.memory_space<vmem>>, vector<4x512xf32>
    tpu.vector_store %arg11[%c20, %c0_18], %40 {strides = array<i32>} : memref<36x512xf32, #tpu.memory_space<vmem>>, vector<4x512xf32>,
    %cst_19 = arith.constant 0.000000e+00 : f32
    %42 = vector.broadcast %cst_19 : f32 to vector<4x15xf32>
    %43 = vector.extract_strided_slice %5 {offsets = [0, 15], sizes = [4, 497], strides = [1, 1]} : vector<4x512xf32> to vector<4x497xf32>
    %44 = tpu.concatenate %43, %42 in 1 : vector<4x497xf32>, vector<4x15xf32> -> vector<4x512xf32>
    %45 = vector.extract_strided_slice %0 {offsets = [6, 0], sizes = [1, 512], strides = [1, 1]} : vector<9x512xf32> to vector<1x512xf32>
    %46 = vector.broadcast %45 : vector<1x512xf32> to vector<4x512xf32>
    %47 = arith.mulf %44, %46 : vector<4x512xf32>
    %c24 = arith.constant 24 : index
    %c0_20 = arith.constant 0 : index
    %48 = vector.load %arg11[%c24, %c0_20] : memref<36x512xf32, #tpu.memory_space<vmem>>, vector<4x512xf32>
    tpu.vector_store %arg11[%c24, %c0_20], %47 {strides = array<i32>} : memref<36x512xf32, #tpu.memory_space<vmem>>, vector<4x512xf32>,
    %cst_21 = arith.constant 0.000000e+00 : f32
    %49 = vector.broadcast %cst_21 : f32 to vector<4x16xf32>
    %50 = vector.extract_strided_slice %5 {offsets = [0, 16], sizes = [4, 496], strides = [1, 1]} : vector<4x512xf32> to vector<4x496xf32>
    %51 = tpu.concatenate %50, %49 in 1 : vector<4x496xf32>, vector<4x16xf32> -> vector<4x512xf32>
    %52 = vector.extract_strided_slice %0 {offsets = [7, 0], sizes = [1, 512], strides = [1, 1]} : vector<9x512xf32> to vector<1x512xf32>
    %53 = vector.broadcast %52 : vector<1x512xf32> to vector<4x512xf32>
    %54 = arith.mulf %51, %53 : vector<4x512xf32>
    %c28 = arith.constant 28 : index
    %c0_22 = arith.constant 0 : index
    %55 = vector.load %arg11[%c28, %c0_22] : memref<36x512xf32, #tpu.memory_space<vmem>>, vector<4x512xf32>
    tpu.vector_store %arg11[%c28, %c0_22], %54 {strides = array<i32>} : memref<36x512xf32, #tpu.memory_space<vmem>>, vector<4x512xf32>,
    %cst_23 = arith.constant 0.000000e+00 : f32
    %56 = vector.broadcast %cst_23 : f32 to vector<4x17xf32>
    %57 = vector.extract_strided_slice %5 {offsets = [0, 17], sizes = [4, 495], strides = [1, 1]} : vector<4x512xf32> to vector<4x495xf32>
    %58 = tpu.concatenate %57, %56 in 1 : vector<4x495xf32>, vector<4x17xf32> -> vector<4x512xf32>
    %59 = vector.extract_strided_slice %0 {offsets = [8, 0], sizes = [1, 512], strides = [1, 1]} : vector<9x512xf32> to vector<1x512xf32>
    %60 = vector.broadcast %59 : vector<1x512xf32> to vector<4x512xf32>
    %61 = arith.mulf %58, %60 : vector<4x512xf32>
    %c32 = arith.constant 32 : index
    %c0_24 = arith.constant 0 : index
    %62 = vector.load %arg11[%c32, %c0_24] : memref<36x512xf32, #tpu.memory_space<vmem>>, vector<4x512xf32>
    tpu.vector_store %arg11[%c32, %c0_24], %61 {strides = array<i32>} : memref<36x512xf32, #tpu.memory_space<vmem>>, vector<4x512xf32>,
    %c0_25 = arith.constant 0 : index
    %c0_26 = arith.constant 0 : index
    %63 = vector.load %arg4[%c0_25, %c0_26] : memref<32x36xf32, #tpu.memory_space<vmem>>, vector<32x36xf32>
    %c0_27 = arith.constant 0 : index
    %c0_28 = arith.constant 0 : index
    %64 = vector.load %arg11[%c0_27, %c0_28] : memref<36x512xf32, #tpu.memory_space<vmem>>, vector<36x512xf32>
    %cst_29 = arith.constant dense<0.000000e+00> : vector<32x512xf32>
    %65 = tpu.matmul %63, %64, %cst_29 {dimension_numbers = #tpu.dot_dimension_numbers<[1], [0], [0], [1], [0, 0, 1, 1], [], []>} : vector<32x36xf32>, vector<36x512xf32>, vector<32x512xf32> -> vector<32x512xf32>
    %c0_30 = arith.constant 0 : index
    %c0_31 = arith.constant 0 : index
    %66 = vector.load %arg5[%c0_30, %c0_31] : memref<32x1xf32, #tpu.memory_space<vmem>>, vector<32x1xf32>
    %c0_32 = arith.constant 0 : index
    %c0_33 = arith.constant 0 : index
    %67 = vector.load %arg6[%c0_32, %c0_33] : memref<32x1xf32, #tpu.memory_space<vmem>>, vector<32x1xf32>
    %cst_34 = arith.constant dense<0.000000e+00> : vector<32xf32>
    %68 = vector.multi_reduction <add>, %65, %cst_34 [1] : vector<32x512xf32> to vector<32xf32>
    %69 = vector.shape_cast %68 : vector<32xf32> to vector<32x1xf32>
    %cst_35 = arith.constant 0.001953125 : f32
    %70 = vector.broadcast %cst_35 : f32 to vector<32x1xf32>
    %71 = arith.mulf %69, %70 : vector<32x1xf32>
    %72 = arith.mulf %65, %65 : vector<32x512xf32>
    %cst_36 = arith.constant dense<0.000000e+00> : vector<32xf32>
    %73 = vector.multi_reduction <add>, %72, %cst_36 [1] : vector<32x512xf32> to vector<32xf32>
    %74 = vector.shape_cast %73 : vector<32xf32> to vector<32x1xf32>
    %cst_37 = arith.constant 0.001953125 : f32
    %75 = vector.broadcast %cst_37 : f32 to vector<32x1xf32>
    %76 = arith.mulf %74, %75 : vector<32x1xf32>
    %77 = arith.mulf %71, %71 : vector<32x1xf32>
    %78 = arith.subf %76, %77 : vector<32x1xf32>
    %79 = vector.broadcast %71 : vector<32x1xf32> to vector<32x512xf32>
    %80 = arith.subf %65, %79 : vector<32x512xf32>
    %cst_38 = arith.constant 9.99999974E-6 : f32
    %81 = vector.broadcast %cst_38 : f32 to vector<32x1xf32>
    %82 = arith.addf %78, %81 : vector<32x1xf32>
    %83 = math.rsqrt %82 : vector<32x1xf32>
    %84 = vector.broadcast %83 : vector<32x1xf32> to vector<32x512xf32>
    %85 = arith.mulf %80, %84 : vector<32x512xf32>
    %86 = vector.broadcast %66 : vector<32x1xf32> to vector<32x512xf32>
    %87 = arith.mulf %85, %86 : vector<32x512xf32>
    %88 = vector.broadcast %67 : vector<32x1xf32> to vector<32x512xf32>
    %89 = arith.addf %87, %88 : vector<32x512xf32>
    %cst_39 = arith.constant 0.000000e+00 : f32
    %90 = vector.broadcast %cst_39 : f32 to vector<32x512xf32>
    %91 = arith.maximumf %89, %90 : vector<32x512xf32>
    %cst_40 = arith.constant 0.000000e+00 : f32
    %92 = vector.broadcast %cst_40 : f32 to vector<32x17xf32>
    %93 = vector.extract_strided_slice %91 {offsets = [0, 0], sizes = [32, 495], strides = [1, 1]} : vector<32x512xf32> to vector<32x495xf32>
    %94 = tpu.concatenate %92, %93 in 1 : vector<32x17xf32>, vector<32x495xf32> -> vector<32x512xf32>
    %95 = vector.extract_strided_slice %0 {offsets = [0, 0], sizes = [1, 512], strides = [1, 1]} : vector<9x512xf32> to vector<1x512xf32>
    %96 = vector.broadcast %95 : vector<1x512xf32> to vector<32x512xf32>
    %97 = arith.mulf %94, %96 : vector<32x512xf32>
    %c0_41 = arith.constant 0 : index
    %c0_42 = arith.constant 0 : index
    %98 = vector.load %arg12[%c0_41, %c0_42] : memref<288x512xf32, #tpu.memory_space<vmem>>, vector<32x512xf32>
    tpu.vector_store %arg12[%c0_41, %c0_42], %97 {strides = array<i32>} : memref<288x512xf32, #tpu.memory_space<vmem>>, vector<32x512xf32>,
    %cst_43 = arith.constant 0.000000e+00 : f32
    %99 = vector.broadcast %cst_43 : f32 to vector<32x16xf32>
    %100 = vector.extract_strided_slice %91 {offsets = [0, 0], sizes = [32, 496], strides = [1, 1]} : vector<32x512xf32> to vector<32x496xf32>
    %101 = tpu.concatenate %99, %100 in 1 : vector<32x16xf32>, vector<32x496xf32> -> vector<32x512xf32>
    %102 = vector.extract_strided_slice %0 {offsets = [1, 0], sizes = [1, 512], strides = [1, 1]} : vector<9x512xf32> to vector<1x512xf32>
    %103 = vector.broadcast %102 : vector<1x512xf32> to vector<32x512xf32>
    %104 = arith.mulf %101, %103 : vector<32x512xf32>
    %c32_44 = arith.constant 32 : index
    %c0_45 = arith.constant 0 : index
    %105 = vector.load %arg12[%c32_44, %c0_45] : memref<288x512xf32, #tpu.memory_space<vmem>>, vector<32x512xf32>
    tpu.vector_store %arg12[%c32_44, %c0_45], %104 {strides = array<i32>} : memref<288x512xf32, #tpu.memory_space<vmem>>, vector<32x512xf32>,
    %cst_46 = arith.constant 0.000000e+00 : f32
    %106 = vector.broadcast %cst_46 : f32 to vector<32x15xf32>
    %107 = vector.extract_strided_slice %91 {offsets = [0, 0], sizes = [32, 497], strides = [1, 1]} : vector<32x512xf32> to vector<32x497xf32>
    %108 = tpu.concatenate %106, %107 in 1 : vector<32x15xf32>, vector<32x497xf32> -> vector<32x512xf32>
    %109 = vector.extract_strided_slice %0 {offsets = [2, 0], sizes = [1, 512], strides = [1, 1]} : vector<9x512xf32> to vector<1x512xf32>
    %110 = vector.broadcast %109 : vector<1x512xf32> to vector<32x512xf32>
    %111 = arith.mulf %108, %110 : vector<32x512xf32>
    %c64 = arith.constant 64 : index
    %c0_47 = arith.constant 0 : index
    %112 = vector.load %arg12[%c64, %c0_47] : memref<288x512xf32, #tpu.memory_space<vmem>>, vector<32x512xf32>
    tpu.vector_store %arg12[%c64, %c0_47], %111 {strides = array<i32>} : memref<288x512xf32, #tpu.memory_space<vmem>>, vector<32x512xf32>,
    %cst_48 = arith.constant 0.000000e+00 : f32
    %113 = vector.broadcast %cst_48 : f32 to vector<32x1xf32>
    %114 = vector.extract_strided_slice %91 {offsets = [0, 0], sizes = [32, 511], strides = [1, 1]} : vector<32x512xf32> to vector<32x511xf32>
    %115 = tpu.concatenate %113, %114 in 1 : vector<32x1xf32>, vector<32x511xf32> -> vector<32x512xf32>
    %116 = vector.extract_strided_slice %0 {offsets = [3, 0], sizes = [1, 512], strides = [1, 1]} : vector<9x512xf32> to vector<1x512xf32>
    %117 = vector.broadcast %116 : vector<1x512xf32> to vector<32x512xf32>
    %118 = arith.mulf %115, %117 : vector<32x512xf32>
    %c96 = arith.constant 96 : index
    %c0_49 = arith.constant 0 : index
    %119 = vector.load %arg12[%c96, %c0_49] : memref<288x512xf32, #tpu.memory_space<vmem>>, vector<32x512xf32>
    tpu.vector_store %arg12[%c96, %c0_49], %118 {strides = array<i32>} : memref<288x512xf32, #tpu.memory_space<vmem>>, vector<32x512xf32>,
    %c128 = arith.constant 128 : index
    %c0_50 = arith.constant 0 : index
    %120 = vector.load %arg12[%c128, %c0_50] : memref<288x512xf32, #tpu.memory_space<vmem>>, vector<32x512xf32>
    tpu.vector_store %arg12[%c128, %c0_50], %91 {strides = array<i32>} : memref<288x512xf32, #tpu.memory_space<vmem>>, vector<32x512xf32>,
    %cst_51 = arith.constant 0.000000e+00 : f32
    %121 = vector.broadcast %cst_51 : f32 to vector<32x1xf32>
    %122 = vector.extract_strided_slice %91 {offsets = [0, 1], sizes = [32, 511], strides = [1, 1]} : vector<32x512xf32> to vector<32x511xf32>
    %123 = tpu.concatenate %122, %121 in 1 : vector<32x511xf32>, vector<32x1xf32> -> vector<32x512xf32>
    %124 = vector.extract_strided_slice %0 {offsets = [5, 0], sizes = [1, 512], strides = [1, 1]} : vector<9x512xf32> to vector<1x512xf32>
    %125 = vector.broadcast %124 : vector<1x512xf32> to vector<32x512xf32>
    %126 = arith.mulf %123, %125 : vector<32x512xf32>
    %c160 = arith.constant 160 : index
    %c0_52 = arith.constant 0 : index
    %127 = vector.load %arg12[%c160, %c0_52] : memref<288x512xf32, #tpu.memory_space<vmem>>, vector<32x512xf32>
    tpu.vector_store %arg12[%c160, %c0_52], %126 {strides = array<i32>} : memref<288x512xf32, #tpu.memory_space<vmem>>, vector<32x512xf32>,
    %cst_53 = arith.constant 0.000000e+00 : f32
    %128 = vector.broadcast %cst_53 : f32 to vector<32x15xf32>
    %129 = vector.extract_strided_slice %91 {offsets = [0, 15], sizes = [32, 497], strides = [1, 1]} : vector<32x512xf32> to vector<32x497xf32>
    %130 = tpu.concatenate %129, %128 in 1 : vector<32x497xf32>, vector<32x15xf32> -> vector<32x512xf32>
    %131 = vector.extract_strided_slice %0 {offsets = [6, 0], sizes = [1, 512], strides = [1, 1]} : vector<9x512xf32> to vector<1x512xf32>
    %132 = vector.broadcast %131 : vector<1x512xf32> to vector<32x512xf32>
    %133 = arith.mulf %130, %132 : vector<32x512xf32>
    %c192 = arith.constant 192 : index
    %c0_54 = arith.constant 0 : index
    %134 = vector.load %arg12[%c192, %c0_54] : memref<288x512xf32, #tpu.memory_space<vmem>>, vector<32x512xf32>
    tpu.vector_store %arg12[%c192, %c0_54], %133 {strides = array<i32>} : memref<288x512xf32, #tpu.memory_space<vmem>>, vector<32x512xf32>,
    %cst_55 = arith.constant 0.000000e+00 : f32
    %135 = vector.broadcast %cst_55 : f32 to vector<32x16xf32>
    %136 = vector.extract_strided_slice %91 {offsets = [0, 16], sizes = [32, 496], strides = [1, 1]} : vector<32x512xf32> to vector<32x496xf32>
    %137 = tpu.concatenate %136, %135 in 1 : vector<32x496xf32>, vector<32x16xf32> -> vector<32x512xf32>
    %138 = vector.extract_strided_slice %0 {offsets = [7, 0], sizes = [1, 512], strides = [1, 1]} : vector<9x512xf32> to vector<1x512xf32>
    %139 = vector.broadcast %138 : vector<1x512xf32> to vector<32x512xf32>
    %140 = arith.mulf %137, %139 : vector<32x512xf32>
    %c224 = arith.constant 224 : index
    %c0_56 = arith.constant 0 : index
    %141 = vector.load %arg12[%c224, %c0_56] : memref<288x512xf32, #tpu.memory_space<vmem>>, vector<32x512xf32>
    tpu.vector_store %arg12[%c224, %c0_56], %140 {strides = array<i32>} : memref<288x512xf32, #tpu.memory_space<vmem>>, vector<32x512xf32>,
    %cst_57 = arith.constant 0.000000e+00 : f32
    %142 = vector.broadcast %cst_57 : f32 to vector<32x17xf32>
    %143 = vector.extract_strided_slice %91 {offsets = [0, 17], sizes = [32, 495], strides = [1, 1]} : vector<32x512xf32> to vector<32x495xf32>
    %144 = tpu.concatenate %143, %142 in 1 : vector<32x495xf32>, vector<32x17xf32> -> vector<32x512xf32>
    %145 = vector.extract_strided_slice %0 {offsets = [8, 0], sizes = [1, 512], strides = [1, 1]} : vector<9x512xf32> to vector<1x512xf32>
    %146 = vector.broadcast %145 : vector<1x512xf32> to vector<32x512xf32>
    %147 = arith.mulf %144, %146 : vector<32x512xf32>
    %c256 = arith.constant 256 : index
    %c0_58 = arith.constant 0 : index
    %148 = vector.load %arg12[%c256, %c0_58] : memref<288x512xf32, #tpu.memory_space<vmem>>, vector<32x512xf32>
    tpu.vector_store %arg12[%c256, %c0_58], %147 {strides = array<i32>} : memref<288x512xf32, #tpu.memory_space<vmem>>, vector<32x512xf32>,
    %c0_59 = arith.constant 0 : index
    %c0_60 = arith.constant 0 : index
    %149 = vector.load %arg7[%c0_59, %c0_60] : memref<32x288xf32, #tpu.memory_space<vmem>>, vector<32x288xf32>
    %c0_61 = arith.constant 0 : index
    %c0_62 = arith.constant 0 : index
    %150 = vector.load %arg12[%c0_61, %c0_62] : memref<288x512xf32, #tpu.memory_space<vmem>>, vector<288x512xf32>
    %cst_63 = arith.constant dense<0.000000e+00> : vector<32x512xf32>
    %151 = tpu.matmul %149, %150, %cst_63 {dimension_numbers = #tpu.dot_dimension_numbers<[1], [0], [0], [1], [0, 0, 1, 1], [], []>} : vector<32x288xf32>, vector<288x512xf32>, vector<32x512xf32> -> vector<32x512xf32>
    %c0_64 = arith.constant 0 : index
    %c0_65 = arith.constant 0 : index
    %152 = vector.load %arg8[%c0_64, %c0_65] : memref<32x1xf32, #tpu.memory_space<vmem>>, vector<32x1xf32>
    %c0_66 = arith.constant 0 : index
    %c0_67 = arith.constant 0 : index
    %153 = vector.load %arg9[%c0_66, %c0_67] : memref<32x1xf32, #tpu.memory_space<vmem>>, vector<32x1xf32>
    %cst_68 = arith.constant dense<0.000000e+00> : vector<32xf32>
    %154 = vector.multi_reduction <add>, %151, %cst_68 [1] : vector<32x512xf32> to vector<32xf32>
    %155 = vector.shape_cast %154 : vector<32xf32> to vector<32x1xf32>
    %cst_69 = arith.constant 0.001953125 : f32
    %156 = vector.broadcast %cst_69 : f32 to vector<32x1xf32>
    %157 = arith.mulf %155, %156 : vector<32x1xf32>
    %158 = arith.mulf %151, %151 : vector<32x512xf32>
    %cst_70 = arith.constant dense<0.000000e+00> : vector<32xf32>
    %159 = vector.multi_reduction <add>, %158, %cst_70 [1] : vector<32x512xf32> to vector<32xf32>
    %160 = vector.shape_cast %159 : vector<32xf32> to vector<32x1xf32>
    %cst_71 = arith.constant 0.001953125 : f32
    %161 = vector.broadcast %cst_71 : f32 to vector<32x1xf32>
    %162 = arith.mulf %160, %161 : vector<32x1xf32>
    %163 = arith.mulf %157, %157 : vector<32x1xf32>
    %164 = arith.subf %162, %163 : vector<32x1xf32>
    %165 = vector.broadcast %157 : vector<32x1xf32> to vector<32x512xf32>
    %166 = arith.subf %151, %165 : vector<32x512xf32>
    %cst_72 = arith.constant 9.99999974E-6 : f32
    %167 = vector.broadcast %cst_72 : f32 to vector<32x1xf32>
    %168 = arith.addf %164, %167 : vector<32x1xf32>
    %169 = math.rsqrt %168 : vector<32x1xf32>
    %170 = vector.broadcast %169 : vector<32x1xf32> to vector<32x512xf32>
    %171 = arith.mulf %166, %170 : vector<32x512xf32>
    %172 = vector.broadcast %152 : vector<32x1xf32> to vector<32x512xf32>
    %173 = arith.mulf %171, %172 : vector<32x512xf32>
    %174 = vector.broadcast %153 : vector<32x1xf32> to vector<32x512xf32>
    %175 = arith.addf %173, %174 : vector<32x512xf32>
    %cst_73 = arith.constant 0.000000e+00 : f32
    %176 = vector.broadcast %cst_73 : f32 to vector<32x512xf32>
    %177 = arith.maximumf %175, %176 : vector<32x512xf32>
    %c0_74 = arith.constant 0 : index
    %c0_75 = arith.constant 0 : index
    %178 = vector.load %arg10[%c0_74, %c0_75] : memref<32x512xf32, #tpu.memory_space<vmem>>, vector<32x512xf32>
    tpu.vector_store %arg10[%c0_74, %c0_75], %177 {strides = array<i32>} : memref<32x512xf32, #tpu.memory_space<vmem>>, vector<32x512xf32>,
    return
  }
}

</mosaic_0001>

<llo_original>
// kernel: simple_upsampling_block.1
$region0: #{simple_upsampling_block.1}
  #allocation0 [shape = 'u32[]', space=smem, size = 0x4, offset = 0x4, fixed_abs, tag = 'smem constant byte address 0x4 - core index']
  #allocation1 [shape = 'u32[144,128]{1,0:T(1,128)}', space=vmem, size = 0x12000, scoped, tag = 'internal scratch']
  #allocation2 [shape = 'f32[36,512]{1,0:T(8,128)}', space=vmem, size = 0x14000, scoped, tag = 'scratch operand']
  #allocation3 [shape = 'f32[288,512]{1,0:T(8,128)}', space=vmem, size = 0x90000, scoped, tag = 'scratch operand']
  %s0 = inlined_call_operand.vmem [shape: f32[4,128], index: 0, kind: input, shape index: {}]
  %s1 = inlined_call_operand.vmem [shape: f32[4,512], index: 1, kind: input, shape index: {}]
  %s2 = inlined_call_operand.vmem [shape: f32[128,512], index: 2, kind: input, shape index: {}]
  %s3 = inlined_call_operand.vmem [shape: f32[9,512], index: 3, kind: input, shape index: {}]
  %s4 = inlined_call_operand.vmem [shape: f32[32,36], index: 4, kind: input, shape index: {}]
  %s5 = inlined_call_operand.vmem [shape: f32[32,1], index: 5, kind: input, shape index: {}]
  %s6 = inlined_call_operand.vmem [shape: f32[32,1], index: 6, kind: input, shape index: {}]
  %s7 = inlined_call_operand.vmem [shape: f32[32,288], index: 7, kind: input, shape index: {}]
  %s8 = inlined_call_operand.vmem [shape: f32[32,1], index: 8, kind: input, shape index: {}]
  %s9 = inlined_call_operand.vmem [shape: f32[32,1], index: 9, kind: input, shape index: {}]
  %s10 = inlined_call_operand.vmem [shape: f32[32,512], index: 10, kind: output, shape index: {}]
  %s11 = sld [smem:[#allocation0]]
  $region50: #{simple_upsampling_block.1} parent=0
    _
  %s13 = ssub.s32 1, %s11
  %s14 = scalar_select 0, %s13, %s11
  // Predicated region
  $region2: #{simple_upsampling_block.1} parent=0 // pred_check
    _
  $region3: #{simple_upsampling_block.1} parent=0 // pred_check_branch
    %16 = sbr.rel (0) target = $region5
  $region4: #{simple_upsampling_block.1} parent=0 // pred_region
    _
  $region5: #{simple_upsampling_block.1} parent=0 // pred_fallthru
    _
  // Predicated region
  $region6: #{simple_upsampling_block.1} parent=0 // pred_check
    _
  $region7: #{simple_upsampling_block.1} parent=0 // pred_check_branch
    %18 = sbr.rel (0) target = $region9
  $region8: #{simple_upsampling_block.1} parent=0 // pred_region
    _
  $region9: #{simple_upsampling_block.1} parent=0 // pred_fallthru
    _
  // Predicated region
  $region10: #{simple_upsampling_block.1} parent=0 // pred_check
    _
  $region11: #{simple_upsampling_block.1} parent=0 // pred_check_branch
    %20 = sbr.rel (0) target = $region13
  $region12: #{simple_upsampling_block.1} parent=0 // pred_region
    _
  $region13: #{simple_upsampling_block.1} parent=0 // pred_fallthru
    _
  // Predicated region
  $region14: #{simple_upsampling_block.1} parent=0 // pred_check
    _
  $region15: #{simple_upsampling_block.1} parent=0 // pred_check_branch
    %22 = sbr.rel (0) target = $region17
  $region16: #{simple_upsampling_block.1} parent=0 // pred_region
    _
  $region17: #{simple_upsampling_block.1} parent=0 // pred_fallthru
    _
  // Predicated region
  $region18: #{simple_upsampling_block.1} parent=0 // pred_check
    _
  $region19: #{simple_upsampling_block.1} parent=0 // pred_check_branch
    %24 = sbr.rel (0) target = $region21
  $region20: #{simple_upsampling_block.1} parent=0 // pred_region
    _
  $region21: #{simple_upsampling_block.1} parent=0 // pred_fallthru
    _
  // Predicated region
  $region22: #{simple_upsampling_block.1} parent=0 // pred_check
    _
  $region23: #{simple_upsampling_block.1} parent=0 // pred_check_branch
    %26 = sbr.rel (0) target = $region25
  $region24: #{simple_upsampling_block.1} parent=0 // pred_region
    _
  $region25: #{simple_upsampling_block.1} parent=0 // pred_fallthru
    _
  // Predicated region
  $region26: #{simple_upsampling_block.1} parent=0 // pred_check
    _
  $region27: #{simple_upsampling_block.1} parent=0 // pred_check_branch
    %28 = sbr.rel (0) target = $region29
  $region28: #{simple_upsampling_block.1} parent=0 // pred_region
    _
  $region29: #{simple_upsampling_block.1} parent=0 // pred_fallthru
    _
  // Predicated region
  $region30: #{simple_upsampling_block.1} parent=0 // pred_check
    _
  $region31: #{simple_upsampling_block.1} parent=0 // pred_check_branch
    %30 = sbr.rel (0) target = $region33
  $region32: #{simple_upsampling_block.1} parent=0 // pred_region
    _
  $region33: #{simple_upsampling_block.1} parent=0 // pred_fallthru
    _
  // Predicated region
  $region34: #{simple_upsampling_block.1} parent=0 // pred_check
    _
  $region35: #{simple_upsampling_block.1} parent=0 // pred_check_branch
    %32 = sbr.rel (0) target = $region37
  $region36: #{simple_upsampling_block.1} parent=0 // pred_region
    _
  $region37: #{simple_upsampling_block.1} parent=0 // pred_fallthru
    _
  // Predicated region
  $region38: #{simple_upsampling_block.1} parent=0 // pred_check
    _
  $region39: #{simple_upsampling_block.1} parent=0 // pred_check_branch
    %34 = sbr.rel (0) target = $region41
  $region40: #{simple_upsampling_block.1} parent=0 // pred_region
    _
  $region41: #{simple_upsampling_block.1} parent=0 // pred_fallthru
    _
  %v35 = vld [vmem:[%s3] sm:$0xff]
  %v36 = vld [vmem:[%s3 + $0x8] sm:$0xff]
  %v37 = vld [vmem:[%s3 + $0x10] sm:$0xff]
  %v38 = vld [vmem:[%s3 + $0x18] sm:$0xff]
  %v39 = vld [vmem:[%s3 + $0x20] sm:$0x1]
  %v40 = vld [vmem:[%s3 + $0x28] sm:$0x1]
  %v41 = vld [vmem:[%s3 + $0x30] sm:$0x1]
  %v42 = vld [vmem:[%s3 + $0x38] sm:$0x1]
  %v43 = vld [vmem:[%s0] sm:$0xf]
  %v44 = vld [vmem:[%s2] sm:$0xff]
  %v45 = vld [vmem:[%s2 + $0x8] sm:$0xff]
  %v46 = vld [vmem:[%s2 + $0x10] sm:$0xff]
  %v47 = vld [vmem:[%s2 + $0x18] sm:$0xff]
  %v48 = vld [vmem:[%s2 + $0x20] sm:$0xff]
  %v49 = vld [vmem:[%s2 + $0x28] sm:$0xff]
  %v50 = vld [vmem:[%s2 + $0x30] sm:$0xff]
  %v51 = vld [vmem:[%s2 + $0x38] sm:$0xff]
  %v52 = vld [vmem:[%s2 + $0x40] sm:$0xff]
  %v53 = vld [vmem:[%s2 + $0x48] sm:$0xff]
  %v54 = vld [vmem:[%s2 + $0x50] sm:$0xff]
  %v55 = vld [vmem:[%s2 + $0x58] sm:$0xff]
  %v56 = vld [vmem:[%s2 + $0x60] sm:$0xff]
  %v57 = vld [vmem:[%s2 + $0x68] sm:$0xff]
  %v58 = vld [vmem:[%s2 + $0x70] sm:$0xff]
  %v59 = vld [vmem:[%s2 + $0x78] sm:$0xff]
  %v60 = vld [vmem:[%s2 + $0x80] sm:$0xff]
  %v61 = vld [vmem:[%s2 + $0x88] sm:$0xff]
  %v62 = vld [vmem:[%s2 + $0x90] sm:$0xff]
  %v63 = vld [vmem:[%s2 + $0x98] sm:$0xff]
  %v64 = vld [vmem:[%s2 + $0xa0] sm:$0xff]
  %v65 = vld [vmem:[%s2 + $0xa8] sm:$0xff]
  %v66 = vld [vmem:[%s2 + $0xb0] sm:$0xff]
  %v67 = vld [vmem:[%s2 + $0xb8] sm:$0xff]
  %v68 = vld [vmem:[%s2 + $0xc0] sm:$0xff]
  %v69 = vld [vmem:[%s2 + $0xc8] sm:$0xff]
  %v70 = vld [vmem:[%s2 + $0xd0] sm:$0xff]
  %v71 = vld [vmem:[%s2 + $0xd8] sm:$0xff]
  %v72 = vld [vmem:[%s2 + $0xe0] sm:$0xff]
  %v73 = vld [vmem:[%s2 + $0xe8] sm:$0xff]
  %v74 = vld [vmem:[%s2 + $0xf0] sm:$0xff]
  %v75 = vld [vmem:[%s2 + $0xf8] sm:$0xff]
  %v76 = vld [vmem:[%s2 + $0x100] sm:$0xff]
  %v77 = vld [vmem:[%s2 + $0x108] sm:$0xff]
  %v78 = vld [vmem:[%s2 + $0x110] sm:$0xff]
  %v79 = vld [vmem:[%s2 + $0x118] sm:$0xff]
  %v80 = vld [vmem:[%s2 + $0x120] sm:$0xff]
  %v81 = vld [vmem:[%s2 + $0x128] sm:$0xff]
  %v82 = vld [vmem:[%s2 + $0x130] sm:$0xff]
  %v83 = vld [vmem:[%s2 + $0x138] sm:$0xff]
  %v84 = vld [vmem:[%s2 + $0x140] sm:$0xff]
  %v85 = vld [vmem:[%s2 + $0x148] sm:$0xff]
  %v86 = vld [vmem:[%s2 + $0x150] sm:$0xff]
  %v87 = vld [vmem:[%s2 + $0x158] sm:$0xff]
  %v88 = vld [vmem:[%s2 + $0x160] sm:$0xff]
  %v89 = vld [vmem:[%s2 + $0x168] sm:$0xff]
  %v90 = vld [vmem:[%s2 + $0x170] sm:$0xff]
  %v91 = vld [vmem:[%s2 + $0x178] sm:$0xff]
  %v92 = vld [vmem:[%s2 + $0x180] sm:$0xff]
  %v93 = vld [vmem:[%s2 + $0x188] sm:$0xff]
  %v94 = vld [vmem:[%s2 + $0x190] sm:$0xff]
  %v95 = vld [vmem:[%s2 + $0x198] sm:$0xff]
  %v96 = vld [vmem:[%s2 + $0x1a0] sm:$0xff]
  %v97 = vld [vmem:[%s2 + $0x1a8] sm:$0xff]
  %v98 = vld [vmem:[%s2 + $0x1b0] sm:$0xff]
  %v99 = vld [vmem:[%s2 + $0x1b8] sm:$0xff]
  %v100 = vld [vmem:[%s2 + $0x1c0] sm:$0xff]
  %v101 = vld [vmem:[%s2 + $0x1c8] sm:$0xff]
  %v102 = vld [vmem:[%s2 + $0x1d0] sm:$0xff]
  %v103 = vld [vmem:[%s2 + $0x1d8] sm:$0xff]
  %v104 = vld [vmem:[%s2 + $0x1e0] sm:$0xff]
  %v105 = vld [vmem:[%s2 + $0x1e8] sm:$0xff]
  %v106 = vld [vmem:[%s2 + $0x1f0] sm:$0xff]
  %v107 = vld [vmem:[%s2 + $0x1f8] sm:$0xff]
  %v108 = vld [vmem:[%s1] sm:$0xff]
  %v109 = vld [vmem:[%s1 + $0x8] sm:$0xff]
  %v112 = vcombine.high %v108, %v108
  %v113 = vcombine.high %v109, %v109
  %116 = vmatprep.subr.mxu0 %v105
  %117 = vmatpush1.msra.mxu0 %v104
  %118 = vmatprep.subr.mxu0 %v101
  %119 = vmatpush1.msra.mxu0 %v100
  %120 = vmatprep.subr.mxu0 %v97
  %121 = vmatpush1.msra.mxu0 %v96
  %122 = vmatprep.subr.mxu0 %v93
  %123 = vmatpush1.msra.mxu0 %v92
  %124 = vmatprep.subr.mxu0 %v89
  %125 = vmatpush1.msra.mxu0 %v88
  %126 = vmatprep.subr.mxu0 %v85
  %127 = vmatpush1.msra.mxu0 %v84
  %128 = vmatprep.subr.mxu0 %v81
  %129 = vmatpush1.msra.mxu0 %v80
  %130 = vmatprep.subr.mxu0 %v77
  %131 = vmatpush1.msra.mxu0 %v76
  %132 = vmatprep.subr.mxu0 %v73
  %133 = vmatpush1.msra.mxu0 %v72
  %134 = vmatprep.subr.mxu0 %v69
  %135 = vmatpush1.msra.mxu0 %v68
  %136 = vmatprep.subr.mxu0 %v65
  %137 = vmatpush1.msra.mxu0 %v64
  %138 = vmatprep.subr.mxu0 %v61
  %139 = vmatpush1.msra.mxu0 %v60
  %140 = vmatprep.subr.mxu0 %v57
  %141 = vmatpush1.msra.mxu0 %v56
  %142 = vmatprep.subr.mxu0 %v53
  %143 = vmatpush1.msra.mxu0 %v52
  %144 = vmatprep.subr.mxu0 %v49
  %145 = vmatpush1.msra.mxu0 %v48
  %146 = vmatprep.subr.mxu0 %v45
  %147 = vmatpush1.msra.mxu0 %v44
  %148 = vmatprep.subr.mxu0 0.0
  %149 = vmatpush2.msra.mxu0 0.0
  %150 = vmatprep.subr.mxu0 0.0
  %151 = vmatpush2.msra.mxu0 0.0
  %152 = vmatprep.subr.mxu0 0.0
  %153 = vmatpush2.msra.mxu0 0.0
  %154 = vmatprep.subr.mxu0 0.0
  %155 = vmatpush2.msra.mxu0 0.0
  %156 = vmatprep.subr.mxu0 0.0
  %157 = vmatpush2.msra.mxu0 0.0
  %158 = vmatprep.subr.mxu0 0.0
  %159 = vmatpush2.msra.mxu0 0.0
  %160 = vmatprep.subr.mxu0 0.0
  %161 = vmatpush2.msra.mxu0 0.0
  %162 = vmatprep.subr.mxu0 0.0
  %163 = vmatpush2.msra.mxu0 0.0
  %164 = vmatprep.subr.mxu0 0.0
  %165 = vmatpush2.msra.mxu0 0.0
  %166 = vmatprep.subr.mxu0 0.0
  %167 = vmatpush2.msra.mxu0 0.0
  %168 = vmatprep.subr.mxu0 0.0
  %169 = vmatpush2.msra.mxu0 0.0
  %170 = vmatprep.subr.mxu0 0.0
  %171 = vmatpush2.msra.mxu0 0.0
  %172 = vmatprep.subr.mxu0 0.0
  %173 = vmatpush2.msra.mxu0 0.0
  %174 = vmatprep.subr.mxu0 0.0
  %175 = vmatpush2.msra.mxu0 0.0
  %176 = vmatprep.subr.mxu0 0.0
  %177 = vmatpush2.msra.mxu0 0.0
  %178 = vmatprep.subr.mxu0 0.0
  %179 = vmatpush2.msra.mxu0 0.0
  %180 = vmatprep.mubr.f32.mxu0 0.0
  %181 = vmatmul.mubr.f32.gmra.mxu0 %v43
  %v182 = vpop.f32.mrf.mxu0
  %v183 = vadd.f32 %v108, %v182
  %v184 = vpop.f32.mrf.mxu0
  %v185 = vadd.f32 %v112, %v184
  %186 = vdwg.mxu0
  %187 = vmatprep.subr.mxu0 %v107
  %188 = vmatpush1.msra.mxu0 %v106
  %189 = vmatprep.subr.mxu0 %v103
  %190 = vmatpush1.msra.mxu0 %v102
  %191 = vmatprep.subr.mxu0 %v99
  %192 = vmatpush1.msra.mxu0 %v98
  %193 = vmatprep.subr.mxu0 %v95
  %194 = vmatpush1.msra.mxu0 %v94
  %195 = vmatprep.subr.mxu0 %v91
  %196 = vmatpush1.msra.mxu0 %v90
  %197 = vmatprep.subr.mxu0 %v87
  %198 = vmatpush1.msra.mxu0 %v86
  %199 = vmatprep.subr.mxu0 %v83
  %200 = vmatpush1.msra.mxu0 %v82
  %201 = vmatprep.subr.mxu0 %v79
  %202 = vmatpush1.msra.mxu0 %v78
  %203 = vmatprep.subr.mxu0 %v75
  %204 = vmatpush1.msra.mxu0 %v74
  %205 = vmatprep.subr.mxu0 %v71
  %206 = vmatpush1.msra.mxu0 %v70
  %207 = vmatprep.subr.mxu0 %v67
  %208 = vmatpush1.msra.mxu0 %v66
  %209 = vmatprep.subr.mxu0 %v63
  %210 = vmatpush1.msra.mxu0 %v62
  %211 = vmatprep.subr.mxu0 %v59
  %212 = vmatpush1.msra.mxu0 %v58
  %213 = vmatprep.subr.mxu0 %v55
  %214 = vmatpush1.msra.mxu0 %v54
  %215 = vmatprep.subr.mxu0 %v51
  %216 = vmatpush1.msra.mxu0 %v50
  %217 = vmatprep.subr.mxu0 %v47
  %218 = vmatpush1.msra.mxu0 %v46
  %219 = vmatprep.subr.mxu0 0.0
  %220 = vmatpush2.msra.mxu0 0.0
  %221 = vmatprep.subr.mxu0 0.0
  %222 = vmatpush2.msra.mxu0 0.0
  %223 = vmatprep.subr.mxu0 0.0
  %224 = vmatpush2.msra.mxu0 0.0
  %225 = vmatprep.subr.mxu0 0.0
  %226 = vmatpush2.msra.mxu0 0.0
  %227 = vmatprep.subr.mxu0 0.0
  %228 = vmatpush2.msra.mxu0 0.0
  %229 = vmatprep.subr.mxu0 0.0
  %230 = vmatpush2.msra.mxu0 0.0
  %231 = vmatprep.subr.mxu0 0.0
  %232 = vmatpush2.msra.mxu0 0.0
  %233 = vmatprep.subr.mxu0 0.0
  %234 = vmatpush2.msra.mxu0 0.0
  %235 = vmatprep.subr.mxu0 0.0
  %236 = vmatpush2.msra.mxu0 0.0
  %237 = vmatprep.subr.mxu0 0.0
  %238 = vmatpush2.msra.mxu0 0.0
  %239 = vmatprep.subr.mxu0 0.0
  %240 = vmatpush2.msra.mxu0 0.0
  %241 = vmatprep.subr.mxu0 0.0
  %242 = vmatpush2.msra.mxu0 0.0
  %243 = vmatprep.subr.mxu0 0.0
  %244 = vmatpush2.msra.mxu0 0.0
  %245 = vmatprep.subr.mxu0 0.0
  %246 = vmatpush2.msra.mxu0 0.0
  %247 = vmatprep.subr.mxu0 0.0
  %248 = vmatpush2.msra.mxu0 0.0
  %249 = vmatprep.subr.mxu0 0.0
  %250 = vmatpush2.msra.mxu0 0.0
  %251 = vmatprep.mubr.f32.mxu0 0.0
  %252 = vmatmul.mubr.f32.gmra.mxu0 %v43
  %v253 = vpop.f32.mrf.mxu0
  %v254 = vadd.f32 %v109, %v253
  %v255 = vpop.f32.mrf.mxu0
  %v256 = vadd.f32 %v113, %v255
  %257 = vdwg.mxu0
  %262 = vrot.lane.b32.xlu0 %v183, 17
  %v263 = vpop.permute.xlu0 %262
  %264 = vrot.lane.b32.xlu0 %v185, 17
  %v265 = vpop.permute.xlu0 %264
  %266 = vrot.lane.b32.xlu0 %v254, 17
  %v267 = vpop.permute.xlu0 %266
  %268 = vrot.lane.b32.xlu0 %v256, 17
  %v269 = vpop.permute.xlu0 %268
  %vm270 = vcmask 138240
  %v271 = vsel %vm270, %v263, %v265
  %v272 = vsel %vm270, %v265, %v267
  %v273 = vsel %vm270, %v267, %v269
  %v278 = vsel %vm270, 0.0, %v263
  %v279 = vlaneseq
  %v280 = vshrl.u32 %v279, 7
  %v281 = vsub.s32 0, %v280
  %v282 = vrot.slane %v35, %v281
  %v283 = vlaneseq
  %v284 = vshrl.u32 %v283, 7
  %v285 = vsub.s32 0, %v284
  %v286 = vrot.slane %v36, %v285
  %v287 = vlaneseq
  %v288 = vshrl.u32 %v287, 7
  %v289 = vsub.s32 0, %v288
  %v290 = vrot.slane %v37, %v289
  %v291 = vlaneseq
  %v292 = vshrl.u32 %v291, 7
  %v293 = vsub.s32 0, %v292
  %v294 = vrot.slane %v38, %v293
  %v295 = vmul.f32 %v278, %v282
  %v296 = vmul.f32 %v271, %v286
  %v297 = vmul.f32 %v272, %v290
  %v298 = vmul.f32 %v273, %v294
  %299 = vst [vmem:[#allocation2] sm:$0xf] %v295
  %300 = vst [vmem:[#allocation2 + $0x8] sm:$0xf] %v296
  %301 = vst [vmem:[#allocation2 + $0x10] sm:$0xf] %v297
  %302 = vst [vmem:[#allocation2 + $0x18] sm:$0xf] %v298
  %303 = vrot.lane.b32.xlu0 %v183, 16
  %v304 = vpop.permute.xlu0 %303
  %305 = vrot.lane.b32.xlu0 %v185, 16
  %v306 = vpop.permute.xlu0 %305
  %307 = vrot.lane.b32.xlu0 %v254, 16
  %v308 = vpop.permute.xlu0 %307
  %309 = vrot.lane.b32.xlu0 %v256, 16
  %v310 = vpop.permute.xlu0 %309
  %vm311 = vcmask 130048
  %v312 = vsel %vm311, %v304, %v306
  %v313 = vsel %vm311, %v306, %v308
  %v314 = vsel %vm311, %v308, %v310
  %v319 = vsel %vm311, 0.0, %v304
  %v320 = vlaneseq
  %v321 = vshrl.u32 %v320, 7
  %v322 = vsub.s32 1, %v321
  %v323 = vrot.slane %v35, %v322
  %v324 = vlaneseq
  %v325 = vshrl.u32 %v324, 7
  %v326 = vsub.s32 1, %v325
  %v327 = vrot.slane %v36, %v326
  %v328 = vlaneseq
  %v329 = vshrl.u32 %v328, 7
  %v330 = vsub.s32 1, %v329
  %v331 = vrot.slane %v37, %v330
  %v332 = vlaneseq
  %v333 = vshrl.u32 %v332, 7
  %v334 = vsub.s32 1, %v333
  %v335 = vrot.slane %v38, %v334
  %v336 = vmul.f32 %v319, %v323
  %v337 = vmul.f32 %v312, %v327
  %v338 = vmul.f32 %v313, %v331
  %v339 = vmul.f32 %v314, %v335
  %v344 = vrot.slane %v336, 4
  %v345 = vrot.slane %v337, 4
  %v346 = vrot.slane %v338, 4
  %v347 = vrot.slane %v339, 4
  %352 = vst [vmem:[#allocation2] sm:$0xf0] %v344
  %353 = vst [vmem:[#allocation2 + $0x8] sm:$0xf0] %v345
  %354 = vst [vmem:[#allocation2 + $0x10] sm:$0xf0] %v346
  %355 = vst [vmem:[#allocation2 + $0x18] sm:$0xf0] %v347
  %356 = vrot.lane.b32.xlu0 %v183, 15
  %v357 = vpop.permute.xlu0 %356
  %358 = vrot.lane.b32.xlu0 %v185, 15
  %v359 = vpop.permute.xlu0 %358
  %360 = vrot.lane.b32.xlu0 %v254, 15
  %v361 = vpop.permute.xlu0 %360
  %362 = vrot.lane.b32.xlu0 %v256, 15
  %v363 = vpop.permute.xlu0 %362
  %vm364 = vcmask 121856
  %v365 = vsel %vm364, %v357, %v359
  %v366 = vsel %vm364, %v359, %v361
  %v367 = vsel %vm364, %v361, %v363
  %v372 = vsel %vm364, 0.0, %v357
  %v373 = vlaneseq
  %v374 = vshrl.u32 %v373, 7
  %v375 = vsub.s32 2, %v374
  %v376 = vrot.slane %v35, %v375
  %v377 = vlaneseq
  %v378 = vshrl.u32 %v377, 7
  %v379 = vsub.s32 2, %v378
  %v380 = vrot.slane %v36, %v379
  %v381 = vlaneseq
  %v382 = vshrl.u32 %v381, 7
  %v383 = vsub.s32 2, %v382
  %v384 = vrot.slane %v37, %v383
  %v385 = vlaneseq
  %v386 = vshrl.u32 %v385, 7
  %v387 = vsub.s32 2, %v386
  %v388 = vrot.slane %v38, %v387
  %v389 = vmul.f32 %v372, %v376
  %v390 = vmul.f32 %v365, %v380
  %v391 = vmul.f32 %v366, %v384
  %v392 = vmul.f32 %v367, %v388
  %393 = vst [vmem:[#allocation2 + $0x20] sm:$0xf] %v389
  %394 = vst [vmem:[#allocation2 + $0x28] sm:$0xf] %v390
  %395 = vst [vmem:[#allocation2 + $0x30] sm:$0xf] %v391
  %396 = vst [vmem:[#allocation2 + $0x38] sm:$0xf] %v392
  %397 = vrot.lane.b32.xlu0 %v183, 1
  %v398 = vpop.permute.xlu0 %397
  %399 = vrot.lane.b32.xlu0 %v185, 1
  %v400 = vpop.permute.xlu0 %399
  %401 = vrot.lane.b32.xlu0 %v254, 1
  %v402 = vpop.permute.xlu0 %401
  %403 = vrot.lane.b32.xlu0 %v256, 1
  %v404 = vpop.permute.xlu0 %403
  %vm405 = vcmask 7168
  %v406 = vsel %vm405, %v398, %v400
  %v407 = vsel %vm405, %v400, %v402
  %v408 = vsel %vm405, %v402, %v404
  %v413 = vsel %vm405, 0.0, %v398
  %v414 = vlaneseq
  %v415 = vshrl.u32 %v414, 7
  %v416 = vsub.s32 3, %v415
  %v417 = vrot.slane %v35, %v416
  %v418 = vlaneseq
  %v419 = vshrl.u32 %v418, 7
  %v420 = vsub.s32 3, %v419
  %v421 = vrot.slane %v36, %v420
  %v422 = vlaneseq
  %v423 = vshrl.u32 %v422, 7
  %v424 = vsub.s32 3, %v423
  %v425 = vrot.slane %v37, %v424
  %v426 = vlaneseq
  %v427 = vshrl.u32 %v426, 7
  %v428 = vsub.s32 3, %v427
  %v429 = vrot.slane %v38, %v428
  %v430 = vmul.f32 %v413, %v417
  %v431 = vmul.f32 %v406, %v421
  %v432 = vmul.f32 %v407, %v425
  %v433 = vmul.f32 %v408, %v429
  %v438 = vrot.slane %v430, 4
  %v439 = vrot.slane %v431, 4
  %v440 = vrot.slane %v432, 4
  %v441 = vrot.slane %v433, 4
  %446 = vst [vmem:[#allocation2 + $0x20] sm:$0xf0] %v438
  %447 = vst [vmem:[#allocation2 + $0x28] sm:$0xf0] %v439
  %448 = vst [vmem:[#allocation2 + $0x30] sm:$0xf0] %v440
  %449 = vst [vmem:[#allocation2 + $0x38] sm:$0xf0] %v441
  %450 = vst [vmem:[#allocation2 + $0x40] sm:$0xf] %v183
  %451 = vst [vmem:[#allocation2 + $0x48] sm:$0xf] %v185
  %452 = vst [vmem:[#allocation2 + $0x50] sm:$0xf] %v254
  %453 = vst [vmem:[#allocation2 + $0x58] sm:$0xf] %v256
  %454 = vrot.lane.b32.xlu0 %v183, 127
  %v455 = vpop.permute.xlu0 %454
  %456 = vrot.lane.b32.xlu0 %v185, 127
  %v457 = vpop.permute.xlu0 %456
  %458 = vrot.lane.b32.xlu0 %v254, 127
  %v459 = vpop.permute.xlu0 %458
  %460 = vrot.lane.b32.xlu0 %v256, 127
  %v461 = vpop.permute.xlu0 %460
  %vm462 = vcmask 1039360
  %v463 = vsel %vm462, %v455, %v457
  %v464 = vsel %vm462, %v457, %v459
  %v465 = vsel %vm462, %v459, %v461
  %v470 = vsel %vm462, %v461, 0.0
  %v471 = vlaneseq
  %v472 = vshrl.u32 %v471, 7
  %v473 = vsub.s32 5, %v472
  %v474 = vrot.slane %v35, %v473
  %v475 = vlaneseq
  %v476 = vshrl.u32 %v475, 7
  %v477 = vsub.s32 5, %v476
  %v478 = vrot.slane %v36, %v477
  %v479 = vlaneseq
  %v480 = vshrl.u32 %v479, 7
  %v481 = vsub.s32 5, %v480
  %v482 = vrot.slane %v37, %v481
  %v483 = vlaneseq
  %v484 = vshrl.u32 %v483, 7
  %v485 = vsub.s32 5, %v484
  %v486 = vrot.slane %v38, %v485
  %v487 = vmul.f32 %v463, %v474
  %v488 = vmul.f32 %v464, %v478
  %v489 = vmul.f32 %v465, %v482
  %v490 = vmul.f32 %v470, %v486
  %v495 = vrot.slane %v487, 4
  %v496 = vrot.slane %v488, 4
  %v497 = vrot.slane %v489, 4
  %v498 = vrot.slane %v490, 4
  %503 = vst [vmem:[#allocation2 + $0x40] sm:$0xf0] %v495
  %504 = vst [vmem:[#allocation2 + $0x48] sm:$0xf0] %v496
  %505 = vst [vmem:[#allocation2 + $0x50] sm:$0xf0] %v497
  %506 = vst [vmem:[#allocation2 + $0x58] sm:$0xf0] %v498
  %507 = vrot.lane.b32.xlu0 %v183, 113
  %v508 = vpop.permute.xlu0 %507
  %509 = vrot.lane.b32.xlu0 %v185, 113
  %v510 = vpop.permute.xlu0 %509
  %511 = vrot.lane.b32.xlu0 %v254, 113
  %v512 = vpop.permute.xlu0 %511
  %513 = vrot.lane.b32.xlu0 %v256, 113
  %v514 = vpop.permute.xlu0 %513
  %vm515 = vcmask 924672
  %v516 = vsel %vm515, %v508, %v510
  %v517 = vsel %vm515, %v510, %v512
  %v518 = vsel %vm515, %v512, %v514
  %v523 = vsel %vm515, %v514, 0.0
  %v524 = vlaneseq
  %v525 = vshrl.u32 %v524, 7
  %v526 = vsub.s32 6, %v525
  %v527 = vrot.slane %v35, %v526
  %v528 = vlaneseq
  %v529 = vshrl.u32 %v528, 7
  %v530 = vsub.s32 6, %v529
  %v531 = vrot.slane %v36, %v530
  %v532 = vlaneseq
  %v533 = vshrl.u32 %v532, 7
  %v534 = vsub.s32 6, %v533
  %v535 = vrot.slane %v37, %v534
  %v536 = vlaneseq
  %v537 = vshrl.u32 %v536, 7
  %v538 = vsub.s32 6, %v537
  %v539 = vrot.slane %v38, %v538
  %v540 = vmul.f32 %v516, %v527
  %v541 = vmul.f32 %v517, %v531
  %v542 = vmul.f32 %v518, %v535
  %v543 = vmul.f32 %v523, %v539
  %544 = vst [vmem:[#allocation2 + $0x60] sm:$0xf] %v540
  %545 = vst [vmem:[#allocation2 + $0x68] sm:$0xf] %v541
  %546 = vst [vmem:[#allocation2 + $0x70] sm:$0xf] %v542
  %547 = vst [vmem:[#allocation2 + $0x78] sm:$0xf] %v543
  %548 = vrot.lane.b32.xlu0 %v183, 112
  %v549 = vpop.permute.xlu0 %548
  %550 = vrot.lane.b32.xlu0 %v185, 112
  %v551 = vpop.permute.xlu0 %550
  %552 = vrot.lane.b32.xlu0 %v254, 112
  %v553 = vpop.permute.xlu0 %552
  %554 = vrot.lane.b32.xlu0 %v256, 112
  %v555 = vpop.permute.xlu0 %554
  %vm556 = vcmask 916480
  %v557 = vsel %vm556, %v549, %v551
  %v558 = vsel %vm556, %v551, %v553
  %v559 = vsel %vm556, %v553, %v555
  %v564 = vsel %vm556, %v555, 0.0
  %v565 = vlaneseq
  %v566 = vshrl.u32 %v565, 7
  %v567 = vsub.s32 7, %v566
  %v568 = vrot.slane %v35, %v567
  %v569 = vlaneseq
  %v570 = vshrl.u32 %v569, 7
  %v571 = vsub.s32 7, %v570
  %v572 = vrot.slane %v36, %v571
  %v573 = vlaneseq
  %v574 = vshrl.u32 %v573, 7
  %v575 = vsub.s32 7, %v574
  %v576 = vrot.slane %v37, %v575
  %v577 = vlaneseq
  %v578 = vshrl.u32 %v577, 7
  %v579 = vsub.s32 7, %v578
  %v580 = vrot.slane %v38, %v579
  %v581 = vmul.f32 %v557, %v568
  %v582 = vmul.f32 %v558, %v572
  %v583 = vmul.f32 %v559, %v576
  %v584 = vmul.f32 %v564, %v580
  %v589 = vrot.slane %v581, 4
  %v590 = vrot.slane %v582, 4
  %v591 = vrot.slane %v583, 4
  %v592 = vrot.slane %v584, 4
  %597 = vst [vmem:[#allocation2 + $0x60] sm:$0xf0] %v589
  %598 = vst [vmem:[#allocation2 + $0x68] sm:$0xf0] %v590
  %599 = vst [vmem:[#allocation2 + $0x70] sm:$0xf0] %v591
  %600 = vst [vmem:[#allocation2 + $0x78] sm:$0xf0] %v592
  %601 = vrot.lane.b32.xlu0 %v183, 111
  %v602 = vpop.permute.xlu0 %601
  %603 = vrot.lane.b32.xlu0 %v185, 111
  %v604 = vpop.permute.xlu0 %603
  %605 = vrot.lane.b32.xlu0 %v254, 111
  %v606 = vpop.permute.xlu0 %605
  %607 = vrot.lane.b32.xlu0 %v256, 111
  %v608 = vpop.permute.xlu0 %607
  %vm609 = vcmask 908288
  %v610 = vsel %vm609, %v602, %v604
  %v611 = vsel %vm609, %v604, %v606
  %v612 = vsel %vm609, %v606, %v608
  %v617 = vsel %vm609, %v608, 0.0
  %v618 = vlaneseq
  %v619 = vshrl.u32 %v618, 7
  %v620 = vsub.s32 0, %v619
  %v621 = vrot.slane %v39, %v620
  %v622 = vlaneseq
  %v623 = vshrl.u32 %v622, 7
  %v624 = vsub.s32 0, %v623
  %v625 = vrot.slane %v40, %v624
  %v626 = vlaneseq
  %v627 = vshrl.u32 %v626, 7
  %v628 = vsub.s32 0, %v627
  %v629 = vrot.slane %v41, %v628
  %v630 = vlaneseq
  %v631 = vshrl.u32 %v630, 7
  %v632 = vsub.s32 0, %v631
  %v633 = vrot.slane %v42, %v632
  %v634 = vmul.f32 %v610, %v621
  %v635 = vmul.f32 %v611, %v625
  %v636 = vmul.f32 %v612, %v629
  %v637 = vmul.f32 %v617, %v633
  %638 = vst [vmem:[#allocation2 + $0x80] sm:$0xf] %v634
  %639 = vst [vmem:[#allocation2 + $0x88] sm:$0xf] %v635
  %640 = vst [vmem:[#allocation2 + $0x90] sm:$0xf] %v636
  %641 = vst [vmem:[#allocation2 + $0x98] sm:$0xf] %v637
  %v642 = vld [vmem:[%s4] sm:$0xff]
  %v643 = vld [vmem:[%s4 + $0x8] sm:$0xff]
  %v644 = vld [vmem:[%s4 + $0x10] sm:$0xff]
  %v645 = vld [vmem:[%s4 + $0x18] sm:$0xff]
  %v646 = vld [vmem:[#allocation2] sm:$0xff]
  %v647 = vld [vmem:[#allocation2 + $0x8] sm:$0xff]
  %v648 = vld [vmem:[#allocation2 + $0x10] sm:$0xff]
  %v649 = vld [vmem:[#allocation2 + $0x18] sm:$0xff]
  %v650 = vld [vmem:[#allocation2 + $0x20] sm:$0xff]
  %v651 = vld [vmem:[#allocation2 + $0x28] sm:$0xff]
  %v652 = vld [vmem:[#allocation2 + $0x30] sm:$0xff]
  %v653 = vld [vmem:[#allocation2 + $0x38] sm:$0xff]
  %v654 = vld [vmem:[#allocation2 + $0x40] sm:$0xff]
  %v655 = vld [vmem:[#allocation2 + $0x48] sm:$0xff]
  %v656 = vld [vmem:[#allocation2 + $0x50] sm:$0xff]
  %v657 = vld [vmem:[#allocation2 + $0x58] sm:$0xff]
  %v658 = vld [vmem:[#allocation2 + $0x60] sm:$0xff]
  %v659 = vld [vmem:[#allocation2 + $0x68] sm:$0xff]
  %v660 = vld [vmem:[#allocation2 + $0x70] sm:$0xff]
  %v661 = vld [vmem:[#allocation2 + $0x78] sm:$0xff]
  %v662 = vld [vmem:[#allocation2 + $0x80] sm:$0xf]
  %v663 = vld [vmem:[#allocation2 + $0x88] sm:$0xf]
  %v664 = vld [vmem:[#allocation2 + $0x90] sm:$0xf]
  %v665 = vld [vmem:[#allocation2 + $0x98] sm:$0xf]
  %vm666 = vcmask 293888
  %v668 = vsel %vm666, %v642, 0
  %v671 = vsel %vm666, %v643, 0
  %v674 = vsel %vm666, %v644, 0
  %v677 = vsel %vm666, %v645, 0
  %vm679 = vcmask 1043456
  %v681 = vsel %vm679, %v662, 0
  %v684 = vsel %vm679, %v663, 0
  %v687 = vsel %vm679, %v664, 0
  %v690 = vsel %vm679, %v665, 0
  %692 = vmatprep.subr.mxu0 0.0
  %693 = vmatpush1.msra.mxu0 0.0
  %694 = vmatprep.subr.mxu0 0.0
  %695 = vmatpush1.msra.mxu0 0.0
  %696 = vmatprep.subr.mxu0 0.0
  %697 = vmatpush1.msra.mxu0 0.0
  %698 = vmatprep.subr.mxu0 0.0
  %699 = vmatpush1.msra.mxu0 0.0
  %700 = vmatprep.subr.mxu0 0.0
  %701 = vmatpush1.msra.mxu0 0.0
  %702 = vmatprep.subr.mxu0 0.0
  %703 = vmatpush1.msra.mxu0 0.0
  %704 = vmatprep.subr.mxu0 0.0
  %705 = vmatpush1.msra.mxu0 0.0
  %706 = vmatprep.subr.mxu0 0.0
  %707 = vmatpush1.msra.mxu0 0.0
  %708 = vmatprep.subr.mxu0 0.0
  %709 = vmatpush1.msra.mxu0 0.0
  %710 = vmatprep.subr.mxu0 0.0
  %711 = vmatpush1.msra.mxu0 0.0
  %712 = vmatprep.subr.mxu0 0.0
  %713 = vmatpush1.msra.mxu0 0.0
  %714 = vmatprep.subr.mxu0 %v684
  %715 = vmatpush1.msra.mxu0 %v681
  %716 = vmatprep.subr.mxu0 %v659
  %717 = vmatpush1.msra.mxu0 %v658
  %718 = vmatprep.subr.mxu0 %v655
  %719 = vmatpush1.msra.mxu0 %v654
  %720 = vmatprep.subr.mxu0 %v651
  %721 = vmatpush1.msra.mxu0 %v650
  %722 = vmatprep.subr.mxu0 %v647
  %723 = vmatpush1.msra.mxu0 %v646
  %724 = vmatprep.subr.mxu0 0.0
  %725 = vmatpush2.msra.mxu0 0.0
  %726 = vmatprep.subr.mxu0 0.0
  %727 = vmatpush2.msra.mxu0 0.0
  %728 = vmatprep.subr.mxu0 0.0
  %729 = vmatpush2.msra.mxu0 0.0
  %730 = vmatprep.subr.mxu0 0.0
  %731 = vmatpush2.msra.mxu0 0.0
  %732 = vmatprep.subr.mxu0 0.0
  %733 = vmatpush2.msra.mxu0 0.0
  %734 = vmatprep.subr.mxu0 0.0
  %735 = vmatpush2.msra.mxu0 0.0
  %736 = vmatprep.subr.mxu0 0.0
  %737 = vmatpush2.msra.mxu0 0.0
  %738 = vmatprep.subr.mxu0 0.0
  %739 = vmatpush2.msra.mxu0 0.0
  %740 = vmatprep.subr.mxu0 0.0
  %741 = vmatpush2.msra.mxu0 0.0
  %742 = vmatprep.subr.mxu0 0.0
  %743 = vmatpush2.msra.mxu0 0.0
  %744 = vmatprep.subr.mxu0 0.0
  %745 = vmatpush2.msra.mxu0 0.0
  %746 = vmatprep.subr.mxu0 0.0
  %747 = vmatpush2.msra.mxu0 0.0
  %748 = vmatprep.subr.mxu0 0.0
  %749 = vmatpush2.msra.mxu0 0.0
  %750 = vmatprep.subr.mxu0 0.0
  %751 = vmatpush2.msra.mxu0 0.0
  %752 = vmatprep.subr.mxu0 0.0
  %753 = vmatpush2.msra.mxu0 0.0
  %754 = vmatprep.subr.mxu0 0.0
  %755 = vmatpush2.msra.mxu0 0.0
  %756 = vmatprep.mubr.f32.mxu0 0.0
  %757 = vmatmul.mubr.f32.gmra.mxu0 %v668
  %v758 = vpop.f32.mrf.mxu0
  %v759 = vadd.f32 0.0, %v758
  %v760 = vpop.f32.mrf.mxu0
  %v761 = vadd.f32 0.0, %v760
  %762 = vmatprep.mubr.f32.mxu0 0.0
  %763 = vmatmul.mubr.f32.gmra.mxu0 %v671
  %v764 = vpop.f32.mrf.mxu0
  %v765 = vadd.f32 0.0, %v764
  %v766 = vpop.f32.mrf.mxu0
  %v767 = vadd.f32 0.0, %v766
  %768 = vmatprep.mubr.f32.mxu0 0.0
  %769 = vmatmul.mubr.f32.gmra.mxu0 %v674
  %v770 = vpop.f32.mrf.mxu0
  %v771 = vadd.f32 0.0, %v770
  %v772 = vpop.f32.mrf.mxu0
  %v773 = vadd.f32 0.0, %v772
  %774 = vmatprep.mubr.f32.mxu0 0.0
  %775 = vmatmul.mubr.f32.gmra.mxu0 %v677
  %v776 = vpop.f32.mrf.mxu0
  %v777 = vadd.f32 0.0, %v776
  %v778 = vpop.f32.mrf.mxu0
  %v779 = vadd.f32 0.0, %v778
  %780 = vdwg.mxu0
  %781 = vmatprep.subr.mxu0 0.0
  %782 = vmatpush1.msra.mxu0 0.0
  %783 = vmatprep.subr.mxu0 0.0
  %784 = vmatpush1.msra.mxu0 0.0
  %785 = vmatprep.subr.mxu0 0.0
  %786 = vmatpush1.msra.mxu0 0.0
  %787 = vmatprep.subr.mxu0 0.0
  %788 = vmatpush1.msra.mxu0 0.0
  %789 = vmatprep.subr.mxu0 0.0
  %790 = vmatpush1.msra.mxu0 0.0
  %791 = vmatprep.subr.mxu0 0.0
  %792 = vmatpush1.msra.mxu0 0.0
  %793 = vmatprep.subr.mxu0 0.0
  %794 = vmatpush1.msra.mxu0 0.0
  %795 = vmatprep.subr.mxu0 0.0
  %796 = vmatpush1.msra.mxu0 0.0
  %797 = vmatprep.subr.mxu0 0.0
  %798 = vmatpush1.msra.mxu0 0.0
  %799 = vmatprep.subr.mxu0 0.0
  %800 = vmatpush1.msra.mxu0 0.0
  %801 = vmatprep.subr.mxu0 0.0
  %802 = vmatpush1.msra.mxu0 0.0
  %803 = vmatprep.subr.mxu0 %v690
  %804 = vmatpush1.msra.mxu0 %v687
  %805 = vmatprep.subr.mxu0 %v661
  %806 = vmatpush1.msra.mxu0 %v660
  %807 = vmatprep.subr.mxu0 %v657
  %808 = vmatpush1.msra.mxu0 %v656
  %809 = vmatprep.subr.mxu0 %v653
  %810 = vmatpush1.msra.mxu0 %v652
  %811 = vmatprep.subr.mxu0 %v649
  %812 = vmatpush1.msra.mxu0 %v648
  %813 = vmatprep.subr.mxu0 0.0
  %814 = vmatpush2.msra.mxu0 0.0
  %815 = vmatprep.subr.mxu0 0.0
  %816 = vmatpush2.msra.mxu0 0.0
  %817 = vmatprep.subr.mxu0 0.0
  %818 = vmatpush2.msra.mxu0 0.0
  %819 = vmatprep.subr.mxu0 0.0
  %820 = vmatpush2.msra.mxu0 0.0
  %821 = vmatprep.subr.mxu0 0.0
  %822 = vmatpush2.msra.mxu0 0.0
  %823 = vmatprep.subr.mxu0 0.0
  %824 = vmatpush2.msra.mxu0 0.0
  %825 = vmatprep.subr.mxu0 0.0
  %826 = vmatpush2.msra.mxu0 0.0
  %827 = vmatprep.subr.mxu0 0.0
  %828 = vmatpush2.msra.mxu0 0.0
  %829 = vmatprep.subr.mxu0 0.0
  %830 = vmatpush2.msra.mxu0 0.0
  %831 = vmatprep.subr.mxu0 0.0
  %832 = vmatpush2.msra.mxu0 0.0
  %833 = vmatprep.subr.mxu0 0.0
  %834 = vmatpush2.msra.mxu0 0.0
  %835 = vmatprep.subr.mxu0 0.0
  %836 = vmatpush2.msra.mxu0 0.0
  %837 = vmatprep.subr.mxu0 0.0
  %838 = vmatpush2.msra.mxu0 0.0
  %839 = vmatprep.subr.mxu0 0.0
  %840 = vmatpush2.msra.mxu0 0.0
  %841 = vmatprep.subr.mxu0 0.0
  %842 = vmatpush2.msra.mxu0 0.0
  %843 = vmatprep.subr.mxu0 0.0
  %844 = vmatpush2.msra.mxu0 0.0
  %845 = vmatprep.mubr.f32.mxu0 0.0
  %846 = vmatmul.mubr.f32.gmra.mxu0 %v668
  %v847 = vpop.f32.mrf.mxu0
  %v848 = vadd.f32 0.0, %v847
  %v849 = vpop.f32.mrf.mxu0
  %v850 = vadd.f32 0.0, %v849
  %851 = vmatprep.mubr.f32.mxu0 0.0
  %852 = vmatmul.mubr.f32.gmra.mxu0 %v671
  %v853 = vpop.f32.mrf.mxu0
  %v854 = vadd.f32 0.0, %v853
  %v855 = vpop.f32.mrf.mxu0
  %v856 = vadd.f32 0.0, %v855
  %857 = vmatprep.mubr.f32.mxu0 0.0
  %858 = vmatmul.mubr.f32.gmra.mxu0 %v674
  %v859 = vpop.f32.mrf.mxu0
  %v860 = vadd.f32 0.0, %v859
  %v861 = vpop.f32.mrf.mxu0
  %v862 = vadd.f32 0.0, %v861
  %863 = vmatprep.mubr.f32.mxu0 0.0
  %864 = vmatmul.mubr.f32.gmra.mxu0 %v677
  %v865 = vpop.f32.mrf.mxu0
  %v866 = vadd.f32 0.0, %v865
  %v867 = vpop.f32.mrf.mxu0
  %v868 = vadd.f32 0.0, %v867
  %869 = vdwg.mxu0
  %v870 = vld [vmem:[%s5] sm:$0xff]
  %v871 = vld [vmem:[%s5 + $0x8] sm:$0xff]
  %v872 = vld [vmem:[%s5 + $0x10] sm:$0xff]
  %v873 = vld [vmem:[%s5 + $0x18] sm:$0xff]
  %v874 = vld [vmem:[%s6] sm:$0xff]
  %v875 = vld [vmem:[%s6 + $0x8] sm:$0xff]
  %v876 = vld [vmem:[%s6 + $0x10] sm:$0xff]
  %v877 = vld [vmem:[%s6 + $0x18] sm:$0xff]
  %v878 = vadd.f32 %v759, %v761
  %v879 = vadd.f32 %v878, %v848
  %v880 = vadd.f32 %v879, %v850
  %881 = vadd.xlane.f32.xlu0 %v880
  %v882 = vpop.xlane.xlu0 %881
  %v883 = vadd.f32 %v765, %v767
  %v884 = vadd.f32 %v883, %v854
  %v885 = vadd.f32 %v884, %v856
  %886 = vadd.xlane.f32.xlu0 %v885
  %v887 = vpop.xlane.xlu0 %886
  %v888 = vadd.f32 %v771, %v773
  %v889 = vadd.f32 %v888, %v860
  %v890 = vadd.f32 %v889, %v862
  %891 = vadd.xlane.f32.xlu0 %v890
  %v892 = vpop.xlane.xlu0 %891
  %v893 = vadd.f32 %v777, %v779
  %v894 = vadd.f32 %v893, %v866
  %v895 = vadd.f32 %v894, %v868
  %896 = vadd.xlane.f32.xlu0 %v895
  %v897 = vpop.xlane.xlu0 %896
  %v898 = vmul.f32 %v882, 0.001953125
  %v899 = vmul.f32 %v887, 0.001953125
  %v900 = vmul.f32 %v892, 0.001953125
  %v901 = vmul.f32 %v897, 0.001953125
  %v902 = vmul.f32 %v759, %v759
  %v903 = vmul.f32 %v761, %v761
  %v904 = vmul.f32 %v848, %v848
  %v905 = vmul.f32 %v850, %v850
  %v906 = vmul.f32 %v765, %v765
  %v907 = vmul.f32 %v767, %v767
  %v908 = vmul.f32 %v854, %v854
  %v909 = vmul.f32 %v856, %v856
  %v910 = vmul.f32 %v771, %v771
  %v911 = vmul.f32 %v773, %v773
  %v912 = vmul.f32 %v860, %v860
  %v913 = vmul.f32 %v862, %v862
  %v914 = vmul.f32 %v777, %v777
  %v915 = vmul.f32 %v779, %v779
  %v916 = vmul.f32 %v866, %v866
  %v917 = vmul.f32 %v868, %v868
  %v918 = vadd.f32 %v902, %v903
  %v919 = vadd.f32 %v918, %v904
  %v920 = vadd.f32 %v919, %v905
  %921 = vadd.xlane.f32.xlu0 %v920
  %v922 = vpop.xlane.xlu0 %921
  %v923 = vadd.f32 %v906, %v907
  %v924 = vadd.f32 %v923, %v908
  %v925 = vadd.f32 %v924, %v909
  %926 = vadd.xlane.f32.xlu0 %v925
  %v927 = vpop.xlane.xlu0 %926
  %v928 = vadd.f32 %v910, %v911
  %v929 = vadd.f32 %v928, %v912
  %v930 = vadd.f32 %v929, %v913
  %931 = vadd.xlane.f32.xlu0 %v930
  %v932 = vpop.xlane.xlu0 %931
  %v933 = vadd.f32 %v914, %v915
  %v934 = vadd.f32 %v933, %v916
  %v935 = vadd.f32 %v934, %v917
  %936 = vadd.xlane.f32.xlu0 %v935
  %v937 = vpop.xlane.xlu0 %936
  %v938 = vmul.f32 %v922, 0.001953125
  %v939 = vmul.f32 %v927, 0.001953125
  %v940 = vmul.f32 %v932, 0.001953125
  %v941 = vmul.f32 %v937, 0.001953125
  %v942 = vmul.f32 %v898, %v898
  %v943 = vmul.f32 %v899, %v899
  %v944 = vmul.f32 %v900, %v900
  %v945 = vmul.f32 %v901, %v901
  %v946 = vsub.f32 %v938, %v942
  %v947 = vsub.f32 %v939, %v943
  %v948 = vsub.f32 %v940, %v944
  %v949 = vsub.f32 %v941, %v945
  %v950 = vsub.f32 %v759, %v898
  %v951 = vsub.f32 %v761, %v898
  %v952 = vsub.f32 %v848, %v898
  %v953 = vsub.f32 %v850, %v898
  %v954 = vsub.f32 %v765, %v899
  %v955 = vsub.f32 %v767, %v899
  %v956 = vsub.f32 %v854, %v899
  %v957 = vsub.f32 %v856, %v899
  %v958 = vsub.f32 %v771, %v900
  %v959 = vsub.f32 %v773, %v900
  %v960 = vsub.f32 %v860, %v900
  %v961 = vsub.f32 %v862, %v900
  %v962 = vsub.f32 %v777, %v901
  %v963 = vsub.f32 %v779, %v901
  %v964 = vsub.f32 %v866, %v901
  %v965 = vsub.f32 %v868, %v901
  %v966 = vadd.f32 %v946, 1e-05
  %v967 = vadd.f32 %v947, 1e-05
  %v968 = vadd.f32 %v948, 1e-05
  %v969 = vadd.f32 %v949, 1e-05
  %v970 = vrsqrt.pop %v966
  %v971 = vrsqrt.pop %v967
  %v972 = vrsqrt.pop %v968
  %v973 = vrsqrt.pop %v969
  %v974 = vmul.f32 %v950, %v970
  %v975 = vmul.f32 %v951, %v970
  %v976 = vmul.f32 %v952, %v970
  %v977 = vmul.f32 %v953, %v970
  %v978 = vmul.f32 %v954, %v971
  %v979 = vmul.f32 %v955, %v971
  %v980 = vmul.f32 %v956, %v971
  %v981 = vmul.f32 %v957, %v971
  %v982 = vmul.f32 %v958, %v972
  %v983 = vmul.f32 %v959, %v972
  %v984 = vmul.f32 %v960, %v972
  %v985 = vmul.f32 %v961, %v972
  %v986 = vmul.f32 %v962, %v973
  %v987 = vmul.f32 %v963, %v973
  %v988 = vmul.f32 %v964, %v973
  %v989 = vmul.f32 %v965, %v973
  %991 = vset.pattern.permute.xlu0 0
  %992 = vperm.xlu0 %991, %v870
  %v993 = vpop.permute.xlu0 %992
  %996 = vset.pattern.permute.xlu0 0
  %997 = vperm.xlu0 %996, %v871
  %v998 = vpop.permute.xlu0 %997
  %1001 = vset.pattern.permute.xlu0 0
  %1002 = vperm.xlu0 %1001, %v872
  %v1003 = vpop.permute.xlu0 %1002
  %1006 = vset.pattern.permute.xlu0 0
  %1007 = vperm.xlu0 %1006, %v873
  %v1008 = vpop.permute.xlu0 %1007
  %v1010 = vmul.f32 %v974, %v993
  %v1011 = vmul.f32 %v975, %v993
  %v1012 = vmul.f32 %v976, %v993
  %v1013 = vmul.f32 %v977, %v993
  %v1014 = vmul.f32 %v978, %v998
  %v1015 = vmul.f32 %v979, %v998
  %v1016 = vmul.f32 %v980, %v998
  %v1017 = vmul.f32 %v981, %v998
  %v1018 = vmul.f32 %v982, %v1003
  %v1019 = vmul.f32 %v983, %v1003
  %v1020 = vmul.f32 %v984, %v1003
  %v1021 = vmul.f32 %v985, %v1003
  %v1022 = vmul.f32 %v986, %v1008
  %v1023 = vmul.f32 %v987, %v1008
  %v1024 = vmul.f32 %v988, %v1008
  %v1025 = vmul.f32 %v989, %v1008
  %1027 = vset.pattern.permute.xlu0 0
  %1028 = vperm.xlu0 %1027, %v874
  %v1029 = vpop.permute.xlu0 %1028
  %1032 = vset.pattern.permute.xlu0 0
  %1033 = vperm.xlu0 %1032, %v875
  %v1034 = vpop.permute.xlu0 %1033
  %1037 = vset.pattern.permute.xlu0 0
  %1038 = vperm.xlu0 %1037, %v876
  %v1039 = vpop.permute.xlu0 %1038
  %1042 = vset.pattern.permute.xlu0 0
  %1043 = vperm.xlu0 %1042, %v877
  %v1044 = vpop.permute.xlu0 %1043
  %v1046 = vadd.f32 %v1010, %v1029
  %v1047 = vadd.f32 %v1011, %v1029
  %v1048 = vadd.f32 %v1012, %v1029
  %v1049 = vadd.f32 %v1013, %v1029
  %v1050 = vadd.f32 %v1014, %v1034
  %v1051 = vadd.f32 %v1015, %v1034
  %v1052 = vadd.f32 %v1016, %v1034
  %v1053 = vadd.f32 %v1017, %v1034
  %v1054 = vadd.f32 %v1018, %v1039
  %v1055 = vadd.f32 %v1019, %v1039
  %v1056 = vadd.f32 %v1020, %v1039
  %v1057 = vadd.f32 %v1021, %v1039
  %v1058 = vadd.f32 %v1022, %v1044
  %v1059 = vadd.f32 %v1023, %v1044
  %v1060 = vadd.f32 %v1024, %v1044
  %v1061 = vadd.f32 %v1025, %v1044
  %v1062 = vmax.f32 %v1046, 0.0
  %v1063 = vmax.f32 %v1047, 0.0
  %v1064 = vmax.f32 %v1048, 0.0
  %v1065 = vmax.f32 %v1049, 0.0
  %v1066 = vmax.f32 %v1050, 0.0
  %v1067 = vmax.f32 %v1051, 0.0
  %v1068 = vmax.f32 %v1052, 0.0
  %v1069 = vmax.f32 %v1053, 0.0
  %v1070 = vmax.f32 %v1054, 0.0
  %v1071 = vmax.f32 %v1055, 0.0
  %v1072 = vmax.f32 %v1056, 0.0
  %v1073 = vmax.f32 %v1057, 0.0
  %v1074 = vmax.f32 %v1058, 0.0
  %v1075 = vmax.f32 %v1059, 0.0
  %v1076 = vmax.f32 %v1060, 0.0
  %v1077 = vmax.f32 %v1061, 0.0
  %1094 = vrot.lane.b32.xlu0 %v1062, 17
  %v1095 = vpop.permute.xlu0 %1094
  %1096 = vrot.lane.b32.xlu0 %v1063, 17
  %v1097 = vpop.permute.xlu0 %1096
  %1098 = vrot.lane.b32.xlu0 %v1064, 17
  %v1099 = vpop.permute.xlu0 %1098
  %1100 = vrot.lane.b32.xlu0 %v1065, 17
  %v1101 = vpop.permute.xlu0 %1100
  %1102 = vrot.lane.b32.xlu0 %v1066, 17
  %v1103 = vpop.permute.xlu0 %1102
  %1104 = vrot.lane.b32.xlu0 %v1067, 17
  %v1105 = vpop.permute.xlu0 %1104
  %1106 = vrot.lane.b32.xlu0 %v1068, 17
  %v1107 = vpop.permute.xlu0 %1106
  %1108 = vrot.lane.b32.xlu0 %v1069, 17
  %v1109 = vpop.permute.xlu0 %1108
  %1110 = vrot.lane.b32.xlu0 %v1070, 17
  %v1111 = vpop.permute.xlu0 %1110
  %1112 = vrot.lane.b32.xlu0 %v1071, 17
  %v1113 = vpop.permute.xlu0 %1112
  %1114 = vrot.lane.b32.xlu0 %v1072, 17
  %v1115 = vpop.permute.xlu0 %1114
  %1116 = vrot.lane.b32.xlu0 %v1073, 17
  %v1117 = vpop.permute.xlu0 %1116
  %1118 = vrot.lane.b32.xlu0 %v1074, 17
  %v1119 = vpop.permute.xlu0 %1118
  %1120 = vrot.lane.b32.xlu0 %v1075, 17
  %v1121 = vpop.permute.xlu0 %1120
  %1122 = vrot.lane.b32.xlu0 %v1076, 17
  %v1123 = vpop.permute.xlu0 %1122
  %1124 = vrot.lane.b32.xlu0 %v1077, 17
  %v1125 = vpop.permute.xlu0 %1124
  %v1126 = vsel %vm270, %v1095, %v1097
  %v1127 = vsel %vm270, %v1097, %v1099
  %v1128 = vsel %vm270, %v1099, %v1101
  %v1129 = vsel %vm270, %v1103, %v1105
  %v1130 = vsel %vm270, %v1105, %v1107
  %v1131 = vsel %vm270, %v1107, %v1109
  %v1132 = vsel %vm270, %v1111, %v1113
  %v1133 = vsel %vm270, %v1113, %v1115
  %v1134 = vsel %vm270, %v1115, %v1117
  %v1135 = vsel %vm270, %v1119, %v1121
  %v1136 = vsel %vm270, %v1121, %v1123
  %v1137 = vsel %vm270, %v1123, %v1125
  %v1154 = vsel %vm270, 0.0, %v1095
  %v1155 = vsel %vm270, 0.0, %v1103
  %v1156 = vsel %vm270, 0.0, %v1111
  %v1157 = vsel %vm270, 0.0, %v1119
  %v1158 = vmul.f32 %v1154, %v282
  %v1159 = vmul.f32 %v1126, %v286
  %v1160 = vmul.f32 %v1127, %v290
  %v1161 = vmul.f32 %v1128, %v294
  %v1162 = vmul.f32 %v1155, %v282
  %v1163 = vmul.f32 %v1129, %v286
  %v1164 = vmul.f32 %v1130, %v290
  %v1165 = vmul.f32 %v1131, %v294
  %v1166 = vmul.f32 %v1156, %v282
  %v1167 = vmul.f32 %v1132, %v286
  %v1168 = vmul.f32 %v1133, %v290
  %v1169 = vmul.f32 %v1134, %v294
  %v1170 = vmul.f32 %v1157, %v282
  %v1171 = vmul.f32 %v1135, %v286
  %v1172 = vmul.f32 %v1136, %v290
  %v1173 = vmul.f32 %v1137, %v294
  %1174 = vst [vmem:[#allocation3] sm:$0xff] %v1158
  %1175 = vst [vmem:[#allocation3 + $0x8] sm:$0xff] %v1159
  %1176 = vst [vmem:[#allocation3 + $0x10] sm:$0xff] %v1160
  %1177 = vst [vmem:[#allocation3 + $0x18] sm:$0xff] %v1161
  %1178 = vst [vmem:[#allocation3 + $0x20] sm:$0xff] %v1162
  %1179 = vst [vmem:[#allocation3 + $0x28] sm:$0xff] %v1163
  %1180 = vst [vmem:[#allocation3 + $0x30] sm:$0xff] %v1164
  %1181 = vst [vmem:[#allocation3 + $0x38] sm:$0xff] %v1165
  %1182 = vst [vmem:[#allocation3 + $0x40] sm:$0xff] %v1166
  %1183 = vst [vmem:[#allocation3 + $0x48] sm:$0xff] %v1167
  %1184 = vst [vmem:[#allocation3 + $0x50] sm:$0xff] %v1168
  %1185 = vst [vmem:[#allocation3 + $0x58] sm:$0xff] %v1169
  %1186 = vst [vmem:[#allocation3 + $0x60] sm:$0xff] %v1170
  %1187 = vst [vmem:[#allocation3 + $0x68] sm:$0xff] %v1171
  %1188 = vst [vmem:[#allocation3 + $0x70] sm:$0xff] %v1172
  %1189 = vst [vmem:[#allocation3 + $0x78] sm:$0xff] %v1173
  %1190 = vrot.lane.b32.xlu0 %v1062, 16
  %v1191 = vpop.permute.xlu0 %1190
  %1192 = vrot.lane.b32.xlu0 %v1063, 16
  %v1193 = vpop.permute.xlu0 %1192
  %1194 = vrot.lane.b32.xlu0 %v1064, 16
  %v1195 = vpop.permute.xlu0 %1194
  %1196 = vrot.lane.b32.xlu0 %v1065, 16
  %v1197 = vpop.permute.xlu0 %1196
  %1198 = vrot.lane.b32.xlu0 %v1066, 16
  %v1199 = vpop.permute.xlu0 %1198
  %1200 = vrot.lane.b32.xlu0 %v1067, 16
  %v1201 = vpop.permute.xlu0 %1200
  %1202 = vrot.lane.b32.xlu0 %v1068, 16
  %v1203 = vpop.permute.xlu0 %1202
  %1204 = vrot.lane.b32.xlu0 %v1069, 16
  %v1205 = vpop.permute.xlu0 %1204
  %1206 = vrot.lane.b32.xlu0 %v1070, 16
  %v1207 = vpop.permute.xlu0 %1206
  %1208 = vrot.lane.b32.xlu0 %v1071, 16
  %v1209 = vpop.permute.xlu0 %1208
  %1210 = vrot.lane.b32.xlu0 %v1072, 16
  %v1211 = vpop.permute.xlu0 %1210
  %1212 = vrot.lane.b32.xlu0 %v1073, 16
  %v1213 = vpop.permute.xlu0 %1212
  %1214 = vrot.lane.b32.xlu0 %v1074, 16
  %v1215 = vpop.permute.xlu0 %1214
  %1216 = vrot.lane.b32.xlu0 %v1075, 16
  %v1217 = vpop.permute.xlu0 %1216
  %1218 = vrot.lane.b32.xlu0 %v1076, 16
  %v1219 = vpop.permute.xlu0 %1218
  %1220 = vrot.lane.b32.xlu0 %v1077, 16
  %v1221 = vpop.permute.xlu0 %1220
  %v1222 = vsel %vm311, %v1191, %v1193
  %v1223 = vsel %vm311, %v1193, %v1195
  %v1224 = vsel %vm311, %v1195, %v1197
  %v1225 = vsel %vm311, %v1199, %v1201
  %v1226 = vsel %vm311, %v1201, %v1203
  %v1227 = vsel %vm311, %v1203, %v1205
  %v1228 = vsel %vm311, %v1207, %v1209
  %v1229 = vsel %vm311, %v1209, %v1211
  %v1230 = vsel %vm311, %v1211, %v1213
  %v1231 = vsel %vm311, %v1215, %v1217
  %v1232 = vsel %vm311, %v1217, %v1219
  %v1233 = vsel %vm311, %v1219, %v1221
  %v1250 = vsel %vm311, 0.0, %v1191
  %v1251 = vsel %vm311, 0.0, %v1199
  %v1252 = vsel %vm311, 0.0, %v1207
  %v1253 = vsel %vm311, 0.0, %v1215
  %v1254 = vmul.f32 %v1250, %v323
  %v1255 = vmul.f32 %v1222, %v327
  %v1256 = vmul.f32 %v1223, %v331
  %v1257 = vmul.f32 %v1224, %v335
  %v1258 = vmul.f32 %v1251, %v323
  %v1259 = vmul.f32 %v1225, %v327
  %v1260 = vmul.f32 %v1226, %v331
  %v1261 = vmul.f32 %v1227, %v335
  %v1262 = vmul.f32 %v1252, %v323
  %v1263 = vmul.f32 %v1228, %v327
  %v1264 = vmul.f32 %v1229, %v331
  %v1265 = vmul.f32 %v1230, %v335
  %v1266 = vmul.f32 %v1253, %v323
  %v1267 = vmul.f32 %v1231, %v327
  %v1268 = vmul.f32 %v1232, %v331
  %v1269 = vmul.f32 %v1233, %v335
  %1270 = vst [vmem:[#allocation3 + $0x80] sm:$0xff] %v1254
  %1271 = vst [vmem:[#allocation3 + $0x88] sm:$0xff] %v1255
  %1272 = vst [vmem:[#allocation3 + $0x90] sm:$0xff] %v1256
  %1273 = vst [vmem:[#allocation3 + $0x98] sm:$0xff] %v1257
  %1274 = vst [vmem:[#allocation3 + $0xa0] sm:$0xff] %v1258
  %1275 = vst [vmem:[#allocation3 + $0xa8] sm:$0xff] %v1259
  %1276 = vst [vmem:[#allocation3 + $0xb0] sm:$0xff] %v1260
  %1277 = vst [vmem:[#allocation3 + $0xb8] sm:$0xff] %v1261
  %1278 = vst [vmem:[#allocation3 + $0xc0] sm:$0xff] %v1262
  %1279 = vst [vmem:[#allocation3 + $0xc8] sm:$0xff] %v1263
  %1280 = vst [vmem:[#allocation3 + $0xd0] sm:$0xff] %v1264
  %1281 = vst [vmem:[#allocation3 + $0xd8] sm:$0xff] %v1265
  %1282 = vst [vmem:[#allocation3 + $0xe0] sm:$0xff] %v1266
  %1283 = vst [vmem:[#allocation3 + $0xe8] sm:$0xff] %v1267
  %1284 = vst [vmem:[#allocation3 + $0xf0] sm:$0xff] %v1268
  %1285 = vst [vmem:[#allocation3 + $0xf8] sm:$0xff] %v1269
  %1286 = vrot.lane.b32.xlu0 %v1062, 15
  %v1287 = vpop.permute.xlu0 %1286
  %1288 = vrot.lane.b32.xlu0 %v1063, 15
  %v1289 = vpop.permute.xlu0 %1288
  %1290 = vrot.lane.b32.xlu0 %v1064, 15
  %v1291 = vpop.permute.xlu0 %1290
  %1292 = vrot.lane.b32.xlu0 %v1065, 15
  %v1293 = vpop.permute.xlu0 %1292
  %1294 = vrot.lane.b32.xlu0 %v1066, 15
  %v1295 = vpop.permute.xlu0 %1294
  %1296 = vrot.lane.b32.xlu0 %v1067, 15
  %v1297 = vpop.permute.xlu0 %1296
  %1298 = vrot.lane.b32.xlu0 %v1068, 15
  %v1299 = vpop.permute.xlu0 %1298
  %1300 = vrot.lane.b32.xlu0 %v1069, 15
  %v1301 = vpop.permute.xlu0 %1300
  %1302 = vrot.lane.b32.xlu0 %v1070, 15
  %v1303 = vpop.permute.xlu0 %1302
  %1304 = vrot.lane.b32.xlu0 %v1071, 15
  %v1305 = vpop.permute.xlu0 %1304
  %1306 = vrot.lane.b32.xlu0 %v1072, 15
  %v1307 = vpop.permute.xlu0 %1306
  %1308 = vrot.lane.b32.xlu0 %v1073, 15
  %v1309 = vpop.permute.xlu0 %1308
  %1310 = vrot.lane.b32.xlu0 %v1074, 15
  %v1311 = vpop.permute.xlu0 %1310
  %1312 = vrot.lane.b32.xlu0 %v1075, 15
  %v1313 = vpop.permute.xlu0 %1312
  %1314 = vrot.lane.b32.xlu0 %v1076, 15
  %v1315 = vpop.permute.xlu0 %1314
  %1316 = vrot.lane.b32.xlu0 %v1077, 15
  %v1317 = vpop.permute.xlu0 %1316
  %v1318 = vsel %vm364, %v1287, %v1289
  %v1319 = vsel %vm364, %v1289, %v1291
  %v1320 = vsel %vm364, %v1291, %v1293
  %v1321 = vsel %vm364, %v1295, %v1297
  %v1322 = vsel %vm364, %v1297, %v1299
  %v1323 = vsel %vm364, %v1299, %v1301
  %v1324 = vsel %vm364, %v1303, %v1305
  %v1325 = vsel %vm364, %v1305, %v1307
  %v1326 = vsel %vm364, %v1307, %v1309
  %v1327 = vsel %vm364, %v1311, %v1313
  %v1328 = vsel %vm364, %v1313, %v1315
  %v1329 = vsel %vm364, %v1315, %v1317
  %v1346 = vsel %vm364, 0.0, %v1287
  %v1347 = vsel %vm364, 0.0, %v1295
  %v1348 = vsel %vm364, 0.0, %v1303
  %v1349 = vsel %vm364, 0.0, %v1311
  %v1350 = vmul.f32 %v1346, %v376
  %v1351 = vmul.f32 %v1318, %v380
  %v1352 = vmul.f32 %v1319, %v384
  %v1353 = vmul.f32 %v1320, %v388
  %v1354 = vmul.f32 %v1347, %v376
  %v1355 = vmul.f32 %v1321, %v380
  %v1356 = vmul.f32 %v1322, %v384
  %v1357 = vmul.f32 %v1323, %v388
  %v1358 = vmul.f32 %v1348, %v376
  %v1359 = vmul.f32 %v1324, %v380
  %v1360 = vmul.f32 %v1325, %v384
  %v1361 = vmul.f32 %v1326, %v388
  %v1362 = vmul.f32 %v1349, %v376
  %v1363 = vmul.f32 %v1327, %v380
  %v1364 = vmul.f32 %v1328, %v384
  %v1365 = vmul.f32 %v1329, %v388
  %1366 = vst [vmem:[#allocation3 + $0x100] sm:$0xff] %v1350
  %1367 = vst [vmem:[#allocation3 + $0x108] sm:$0xff] %v1351
  %1368 = vst [vmem:[#allocation3 + $0x110] sm:$0xff] %v1352
  %1369 = vst [vmem:[#allocation3 + $0x118] sm:$0xff] %v1353
  %1370 = vst [vmem:[#allocation3 + $0x120] sm:$0xff] %v1354
  %1371 = vst [vmem:[#allocation3 + $0x128] sm:$0xff] %v1355
  %1372 = vst [vmem:[#allocation3 + $0x130] sm:$0xff] %v1356
  %1373 = vst [vmem:[#allocation3 + $0x138] sm:$0xff] %v1357
  %1374 = vst [vmem:[#allocation3 + $0x140] sm:$0xff] %v1358
  %1375 = vst [vmem:[#allocation3 + $0x148] sm:$0xff] %v1359
  %1376 = vst [vmem:[#allocation3 + $0x150] sm:$0xff] %v1360
  %1377 = vst [vmem:[#allocation3 + $0x158] sm:$0xff] %v1361
  %1378 = vst [vmem:[#allocation3 + $0x160] sm:$0xff] %v1362
  %1379 = vst [vmem:[#allocation3 + $0x168] sm:$0xff] %v1363
  %1380 = vst [vmem:[#allocation3 + $0x170] sm:$0xff] %v1364
  %1381 = vst [vmem:[#allocation3 + $0x178] sm:$0xff] %v1365
  %1382 = vrot.lane.b32.xlu0 %v1062, 1
  %v1383 = vpop.permute.xlu0 %1382
  %1384 = vrot.lane.b32.xlu0 %v1063, 1
  %v1385 = vpop.permute.xlu0 %1384
  %1386 = vrot.lane.b32.xlu0 %v1064, 1
  %v1387 = vpop.permute.xlu0 %1386
  %1388 = vrot.lane.b32.xlu0 %v1065, 1
  %v1389 = vpop.permute.xlu0 %1388
  %1390 = vrot.lane.b32.xlu0 %v1066, 1
  %v1391 = vpop.permute.xlu0 %1390
  %1392 = vrot.lane.b32.xlu0 %v1067, 1
  %v1393 = vpop.permute.xlu0 %1392
  %1394 = vrot.lane.b32.xlu0 %v1068, 1
  %v1395 = vpop.permute.xlu0 %1394
  %1396 = vrot.lane.b32.xlu0 %v1069, 1
  %v1397 = vpop.permute.xlu0 %1396
  %1398 = vrot.lane.b32.xlu0 %v1070, 1
  %v1399 = vpop.permute.xlu0 %1398
  %1400 = vrot.lane.b32.xlu0 %v1071, 1
  %v1401 = vpop.permute.xlu0 %1400
  %1402 = vrot.lane.b32.xlu0 %v1072, 1
  %v1403 = vpop.permute.xlu0 %1402
  %1404 = vrot.lane.b32.xlu0 %v1073, 1
  %v1405 = vpop.permute.xlu0 %1404
  %1406 = vrot.lane.b32.xlu0 %v1074, 1
  %v1407 = vpop.permute.xlu0 %1406
  %1408 = vrot.lane.b32.xlu0 %v1075, 1
  %v1409 = vpop.permute.xlu0 %1408
  %1410 = vrot.lane.b32.xlu0 %v1076, 1
  %v1411 = vpop.permute.xlu0 %1410
  %1412 = vrot.lane.b32.xlu0 %v1077, 1
  %v1413 = vpop.permute.xlu0 %1412
  %v1414 = vsel %vm405, %v1383, %v1385
  %v1415 = vsel %vm405, %v1385, %v1387
  %v1416 = vsel %vm405, %v1387, %v1389
  %v1417 = vsel %vm405, %v1391, %v1393
  %v1418 = vsel %vm405, %v1393, %v1395
  %v1419 = vsel %vm405, %v1395, %v1397
  %v1420 = vsel %vm405, %v1399, %v1401
  %v1421 = vsel %vm405, %v1401, %v1403
  %v1422 = vsel %vm405, %v1403, %v1405
  %v1423 = vsel %vm405, %v1407, %v1409
  %v1424 = vsel %vm405, %v1409, %v1411
  %v1425 = vsel %vm405, %v1411, %v1413
  %v1442 = vsel %vm405, 0.0, %v1383
  %v1443 = vsel %vm405, 0.0, %v1391
  %v1444 = vsel %vm405, 0.0, %v1399
  %v1445 = vsel %vm405, 0.0, %v1407
  %v1446 = vmul.f32 %v1442, %v417
  %v1447 = vmul.f32 %v1414, %v421
  %v1448 = vmul.f32 %v1415, %v425
  %v1449 = vmul.f32 %v1416, %v429
  %v1450 = vmul.f32 %v1443, %v417
  %v1451 = vmul.f32 %v1417, %v421
  %v1452 = vmul.f32 %v1418, %v425
  %v1453 = vmul.f32 %v1419, %v429
  %v1454 = vmul.f32 %v1444, %v417
  %v1455 = vmul.f32 %v1420, %v421
  %v1456 = vmul.f32 %v1421, %v425
  %v1457 = vmul.f32 %v1422, %v429
  %v1458 = vmul.f32 %v1445, %v417
  %v1459 = vmul.f32 %v1423, %v421
  %v1460 = vmul.f32 %v1424, %v425
  %v1461 = vmul.f32 %v1425, %v429
  %1462 = vst [vmem:[#allocation3 + $0x180] sm:$0xff] %v1446
  %1463 = vst [vmem:[#allocation3 + $0x188] sm:$0xff] %v1447
  %1464 = vst [vmem:[#allocation3 + $0x190] sm:$0xff] %v1448
  %1465 = vst [vmem:[#allocation3 + $0x198] sm:$0xff] %v1449
  %1466 = vst [vmem:[#allocation3 + $0x1a0] sm:$0xff] %v1450
  %1467 = vst [vmem:[#allocation3 + $0x1a8] sm:$0xff] %v1451
  %1468 = vst [vmem:[#allocation3 + $0x1b0] sm:$0xff] %v1452
  %1469 = vst [vmem:[#allocation3 + $0x1b8] sm:$0xff] %v1453
  %1470 = vst [vmem:[#allocation3 + $0x1c0] sm:$0xff] %v1454
  %1471 = vst [vmem:[#allocation3 + $0x1c8] sm:$0xff] %v1455
  %1472 = vst [vmem:[#allocation3 + $0x1d0] sm:$0xff] %v1456
  %1473 = vst [vmem:[#allocation3 + $0x1d8] sm:$0xff] %v1457
  %1474 = vst [vmem:[#allocation3 + $0x1e0] sm:$0xff] %v1458
  %1475 = vst [vmem:[#allocation3 + $0x1e8] sm:$0xff] %v1459
  %1476 = vst [vmem:[#allocation3 + $0x1f0] sm:$0xff] %v1460
  %1477 = vst [vmem:[#allocation3 + $0x1f8] sm:$0xff] %v1461
  %1478 = vst [vmem:[#allocation3 + $0x200] sm:$0xff] %v1062
  %1479 = vst [vmem:[#allocation3 + $0x208] sm:$0xff] %v1063
  %1480 = vst [vmem:[#allocation3 + $0x210] sm:$0xff] %v1064
  %1481 = vst [vmem:[#allocation3 + $0x218] sm:$0xff] %v1065
  %1482 = vst [vmem:[#allocation3 + $0x220] sm:$0xff] %v1066
  %1483 = vst [vmem:[#allocation3 + $0x228] sm:$0xff] %v1067
  %1484 = vst [vmem:[#allocation3 + $0x230] sm:$0xff] %v1068
  %1485 = vst [vmem:[#allocation3 + $0x238] sm:$0xff] %v1069
  %1486 = vst [vmem:[#allocation3 + $0x240] sm:$0xff] %v1070
  %1487 = vst [vmem:[#allocation3 + $0x248] sm:$0xff] %v1071
  %1488 = vst [vmem:[#allocation3 + $0x250] sm:$0xff] %v1072
  %1489 = vst [vmem:[#allocation3 + $0x258] sm:$0xff] %v1073
  %1490 = vst [vmem:[#allocation3 + $0x260] sm:$0xff] %v1074
  %1491 = vst [vmem:[#allocation3 + $0x268] sm:$0xff] %v1075
  %1492 = vst [vmem:[#allocation3 + $0x270] sm:$0xff] %v1076
  %1493 = vst [vmem:[#allocation3 + $0x278] sm:$0xff] %v1077
  %1494 = vrot.lane.b32.xlu0 %v1062, 127
  %v1495 = vpop.permute.xlu0 %1494
  %1496 = vrot.lane.b32.xlu0 %v1063, 127
  %v1497 = vpop.permute.xlu0 %1496
  %1498 = vrot.lane.b32.xlu0 %v1064, 127
  %v1499 = vpop.permute.xlu0 %1498
  %1500 = vrot.lane.b32.xlu0 %v1065, 127
  %v1501 = vpop.permute.xlu0 %1500
  %1502 = vrot.lane.b32.xlu0 %v1066, 127
  %v1503 = vpop.permute.xlu0 %1502
  %1504 = vrot.lane.b32.xlu0 %v1067, 127
  %v1505 = vpop.permute.xlu0 %1504
  %1506 = vrot.lane.b32.xlu0 %v1068, 127
  %v1507 = vpop.permute.xlu0 %1506
  %1508 = vrot.lane.b32.xlu0 %v1069, 127
  %v1509 = vpop.permute.xlu0 %1508
  %1510 = vrot.lane.b32.xlu0 %v1070, 127
  %v1511 = vpop.permute.xlu0 %1510
  %1512 = vrot.lane.b32.xlu0 %v1071, 127
  %v1513 = vpop.permute.xlu0 %1512
  %1514 = vrot.lane.b32.xlu0 %v1072, 127
  %v1515 = vpop.permute.xlu0 %1514
  %1516 = vrot.lane.b32.xlu0 %v1073, 127
  %v1517 = vpop.permute.xlu0 %1516
  %1518 = vrot.lane.b32.xlu0 %v1074, 127
  %v1519 = vpop.permute.xlu0 %1518
  %1520 = vrot.lane.b32.xlu0 %v1075, 127
  %v1521 = vpop.permute.xlu0 %1520
  %1522 = vrot.lane.b32.xlu0 %v1076, 127
  %v1523 = vpop.permute.xlu0 %1522
  %1524 = vrot.lane.b32.xlu0 %v1077, 127
  %v1525 = vpop.permute.xlu0 %1524
  %v1526 = vsel %vm462, %v1495, %v1497
  %v1527 = vsel %vm462, %v1497, %v1499
  %v1528 = vsel %vm462, %v1499, %v1501
  %v1529 = vsel %vm462, %v1503, %v1505
  %v1530 = vsel %vm462, %v1505, %v1507
  %v1531 = vsel %vm462, %v1507, %v1509
  %v1532 = vsel %vm462, %v1511, %v1513
  %v1533 = vsel %vm462, %v1513, %v1515
  %v1534 = vsel %vm462, %v1515, %v1517
  %v1535 = vsel %vm462, %v1519, %v1521
  %v1536 = vsel %vm462, %v1521, %v1523
  %v1537 = vsel %vm462, %v1523, %v1525
  %v1554 = vsel %vm462, %v1501, 0.0
  %v1555 = vsel %vm462, %v1509, 0.0
  %v1556 = vsel %vm462, %v1517, 0.0
  %v1557 = vsel %vm462, %v1525, 0.0
  %v1558 = vmul.f32 %v1526, %v474
  %v1559 = vmul.f32 %v1527, %v478
  %v1560 = vmul.f32 %v1528, %v482
  %v1561 = vmul.f32 %v1554, %v486
  %v1562 = vmul.f32 %v1529, %v474
  %v1563 = vmul.f32 %v1530, %v478
  %v1564 = vmul.f32 %v1531, %v482
  %v1565 = vmul.f32 %v1555, %v486
  %v1566 = vmul.f32 %v1532, %v474
  %v1567 = vmul.f32 %v1533, %v478
  %v1568 = vmul.f32 %v1534, %v482
  %v1569 = vmul.f32 %v1556, %v486
  %v1570 = vmul.f32 %v1535, %v474
  %v1571 = vmul.f32 %v1536, %v478
  %v1572 = vmul.f32 %v1537, %v482
  %v1573 = vmul.f32 %v1557, %v486
  %1574 = vst [vmem:[#allocation3 + $0x280] sm:$0xff] %v1558
  %1575 = vst [vmem:[#allocation3 + $0x288] sm:$0xff] %v1559
  %1576 = vst [vmem:[#allocation3 + $0x290] sm:$0xff] %v1560
  %1577 = vst [vmem:[#allocation3 + $0x298] sm:$0xff] %v1561
  %1578 = vst [vmem:[#allocation3 + $0x2a0] sm:$0xff] %v1562
  %1579 = vst [vmem:[#allocation3 + $0x2a8] sm:$0xff] %v1563
  %1580 = vst [vmem:[#allocation3 + $0x2b0] sm:$0xff] %v1564
  %1581 = vst [vmem:[#allocation3 + $0x2b8] sm:$0xff] %v1565
  %1582 = vst [vmem:[#allocation3 + $0x2c0] sm:$0xff] %v1566
  %1583 = vst [vmem:[#allocation3 + $0x2c8] sm:$0xff] %v1567
  %1584 = vst [vmem:[#allocation3 + $0x2d0] sm:$0xff] %v1568
  %1585 = vst [vmem:[#allocation3 + $0x2d8] sm:$0xff] %v1569
  %1586 = vst [vmem:[#allocation3 + $0x2e0] sm:$0xff] %v1570
  %1587 = vst [vmem:[#allocation3 + $0x2e8] sm:$0xff] %v1571
  %1588 = vst [vmem:[#allocation3 + $0x2f0] sm:$0xff] %v1572
  %1589 = vst [vmem:[#allocation3 + $0x2f8] sm:$0xff] %v1573
  %1590 = vrot.lane.b32.xlu0 %v1062, 113
  %v1591 = vpop.permute.xlu0 %1590
  %1592 = vrot.lane.b32.xlu0 %v1063, 113
  %v1593 = vpop.permute.xlu0 %1592
  %1594 = vrot.lane.b32.xlu0 %v1064, 113
  %v1595 = vpop.permute.xlu0 %1594
  %1596 = vrot.lane.b32.xlu0 %v1065, 113
  %v1597 = vpop.permute.xlu0 %1596
  %1598 = vrot.lane.b32.xlu0 %v1066, 113
  %v1599 = vpop.permute.xlu0 %1598
  %1600 = vrot.lane.b32.xlu0 %v1067, 113
  %v1601 = vpop.permute.xlu0 %1600
  %1602 = vrot.lane.b32.xlu0 %v1068, 113
  %v1603 = vpop.permute.xlu0 %1602
  %1604 = vrot.lane.b32.xlu0 %v1069, 113
  %v1605 = vpop.permute.xlu0 %1604
  %1606 = vrot.lane.b32.xlu0 %v1070, 113
  %v1607 = vpop.permute.xlu0 %1606
  %1608 = vrot.lane.b32.xlu0 %v1071, 113
  %v1609 = vpop.permute.xlu0 %1608
  %1610 = vrot.lane.b32.xlu0 %v1072, 113
  %v1611 = vpop.permute.xlu0 %1610
  %1612 = vrot.lane.b32.xlu0 %v1073, 113
  %v1613 = vpop.permute.xlu0 %1612
  %1614 = vrot.lane.b32.xlu0 %v1074, 113
  %v1615 = vpop.permute.xlu0 %1614
  %1616 = vrot.lane.b32.xlu0 %v1075, 113
  %v1617 = vpop.permute.xlu0 %1616
  %1618 = vrot.lane.b32.xlu0 %v1076, 113
  %v1619 = vpop.permute.xlu0 %1618
  %1620 = vrot.lane.b32.xlu0 %v1077, 113
  %v1621 = vpop.permute.xlu0 %1620
  %v1622 = vsel %vm515, %v1591, %v1593
  %v1623 = vsel %vm515, %v1593, %v1595
  %v1624 = vsel %vm515, %v1595, %v1597
  %v1625 = vsel %vm515, %v1599, %v1601
  %v1626 = vsel %vm515, %v1601, %v1603
  %v1627 = vsel %vm515, %v1603, %v1605
  %v1628 = vsel %vm515, %v1607, %v1609
  %v1629 = vsel %vm515, %v1609, %v1611
  %v1630 = vsel %vm515, %v1611, %v1613
  %v1631 = vsel %vm515, %v1615, %v1617
  %v1632 = vsel %vm515, %v1617, %v1619
  %v1633 = vsel %vm515, %v1619, %v1621
  %v1650 = vsel %vm515, %v1597, 0.0
  %v1651 = vsel %vm515, %v1605, 0.0
  %v1652 = vsel %vm515, %v1613, 0.0
  %v1653 = vsel %vm515, %v1621, 0.0
  %v1654 = vmul.f32 %v1622, %v527
  %v1655 = vmul.f32 %v1623, %v531
  %v1656 = vmul.f32 %v1624, %v535
  %v1657 = vmul.f32 %v1650, %v539
  %v1658 = vmul.f32 %v1625, %v527
  %v1659 = vmul.f32 %v1626, %v531
  %v1660 = vmul.f32 %v1627, %v535
  %v1661 = vmul.f32 %v1651, %v539
  %v1662 = vmul.f32 %v1628, %v527
  %v1663 = vmul.f32 %v1629, %v531
  %v1664 = vmul.f32 %v1630, %v535
  %v1665 = vmul.f32 %v1652, %v539
  %v1666 = vmul.f32 %v1631, %v527
  %v1667 = vmul.f32 %v1632, %v531
  %v1668 = vmul.f32 %v1633, %v535
  %v1669 = vmul.f32 %v1653, %v539
  %1670 = vst [vmem:[#allocation3 + $0x300] sm:$0xff] %v1654
  %1671 = vst [vmem:[#allocation3 + $0x308] sm:$0xff] %v1655
  %1672 = vst [vmem:[#allocation3 + $0x310] sm:$0xff] %v1656
  %1673 = vst [vmem:[#allocation3 + $0x318] sm:$0xff] %v1657
  %1674 = vst [vmem:[#allocation3 + $0x320] sm:$0xff] %v1658
  %1675 = vst [vmem:[#allocation3 + $0x328] sm:$0xff] %v1659
  %1676 = vst [vmem:[#allocation3 + $0x330] sm:$0xff] %v1660
  %1677 = vst [vmem:[#allocation3 + $0x338] sm:$0xff] %v1661
  %1678 = vst [vmem:[#allocation3 + $0x340] sm:$0xff] %v1662
  %1679 = vst [vmem:[#allocation3 + $0x348] sm:$0xff] %v1663
  %1680 = vst [vmem:[#allocation3 + $0x350] sm:$0xff] %v1664
  %1681 = vst [vmem:[#allocation3 + $0x358] sm:$0xff] %v1665
  %1682 = vst [vmem:[#allocation3 + $0x360] sm:$0xff] %v1666
  %1683 = vst [vmem:[#allocation3 + $0x368] sm:$0xff] %v1667
  %1684 = vst [vmem:[#allocation3 + $0x370] sm:$0xff] %v1668
  %1685 = vst [vmem:[#allocation3 + $0x378] sm:$0xff] %v1669
  %1686 = vrot.lane.b32.xlu0 %v1062, 112
  %v1687 = vpop.permute.xlu0 %1686
  %1688 = vrot.lane.b32.xlu0 %v1063, 112
  %v1689 = vpop.permute.xlu0 %1688
  %1690 = vrot.lane.b32.xlu0 %v1064, 112
  %v1691 = vpop.permute.xlu0 %1690
  %1692 = vrot.lane.b32.xlu0 %v1065, 112
  %v1693 = vpop.permute.xlu0 %1692
  %1694 = vrot.lane.b32.xlu0 %v1066, 112
  %v1695 = vpop.permute.xlu0 %1694
  %1696 = vrot.lane.b32.xlu0 %v1067, 112
  %v1697 = vpop.permute.xlu0 %1696
  %1698 = vrot.lane.b32.xlu0 %v1068, 112
  %v1699 = vpop.permute.xlu0 %1698
  %1700 = vrot.lane.b32.xlu0 %v1069, 112
  %v1701 = vpop.permute.xlu0 %1700
  %1702 = vrot.lane.b32.xlu0 %v1070, 112
  %v1703 = vpop.permute.xlu0 %1702
  %1704 = vrot.lane.b32.xlu0 %v1071, 112
  %v1705 = vpop.permute.xlu0 %1704
  %1706 = vrot.lane.b32.xlu0 %v1072, 112
  %v1707 = vpop.permute.xlu0 %1706
  %1708 = vrot.lane.b32.xlu0 %v1073, 112
  %v1709 = vpop.permute.xlu0 %1708
  %1710 = vrot.lane.b32.xlu0 %v1074, 112
  %v1711 = vpop.permute.xlu0 %1710
  %1712 = vrot.lane.b32.xlu0 %v1075, 112
  %v1713 = vpop.permute.xlu0 %1712
  %1714 = vrot.lane.b32.xlu0 %v1076, 112
  %v1715 = vpop.permute.xlu0 %1714
  %1716 = vrot.lane.b32.xlu0 %v1077, 112
  %v1717 = vpop.permute.xlu0 %1716
  %v1718 = vsel %vm556, %v1687, %v1689
  %v1719 = vsel %vm556, %v1689, %v1691
  %v1720 = vsel %vm556, %v1691, %v1693
  %v1721 = vsel %vm556, %v1695, %v1697
  %v1722 = vsel %vm556, %v1697, %v1699
  %v1723 = vsel %vm556, %v1699, %v1701
  %v1724 = vsel %vm556, %v1703, %v1705
  %v1725 = vsel %vm556, %v1705, %v1707
  %v1726 = vsel %vm556, %v1707, %v1709
  %v1727 = vsel %vm556, %v1711, %v1713
  %v1728 = vsel %vm556, %v1713, %v1715
  %v1729 = vsel %vm556, %v1715, %v1717
  %v1746 = vsel %vm556, %v1693, 0.0
  %v1747 = vsel %vm556, %v1701, 0.0
  %v1748 = vsel %vm556, %v1709, 0.0
  %v1749 = vsel %vm556, %v1717, 0.0
  %v1750 = vmul.f32 %v1718, %v568
  %v1751 = vmul.f32 %v1719, %v572
  %v1752 = vmul.f32 %v1720, %v576
  %v1753 = vmul.f32 %v1746, %v580
  %v1754 = vmul.f32 %v1721, %v568
  %v1755 = vmul.f32 %v1722, %v572
  %v1756 = vmul.f32 %v1723, %v576
  %v1757 = vmul.f32 %v1747, %v580
  %v1758 = vmul.f32 %v1724, %v568
  %v1759 = vmul.f32 %v1725, %v572
  %v1760 = vmul.f32 %v1726, %v576
  %v1761 = vmul.f32 %v1748, %v580
  %v1762 = vmul.f32 %v1727, %v568
  %v1763 = vmul.f32 %v1728, %v572
  %v1764 = vmul.f32 %v1729, %v576
  %v1765 = vmul.f32 %v1749, %v580
  %1766 = vst [vmem:[#allocation3 + $0x380] sm:$0xff] %v1750
  %1767 = vst [vmem:[#allocation3 + $0x388] sm:$0xff] %v1751
  %1768 = vst [vmem:[#allocation3 + $0x390] sm:$0xff] %v1752
  %1769 = vst [vmem:[#allocation3 + $0x398] sm:$0xff] %v1753
  %1770 = vst [vmem:[#allocation3 + $0x3a0] sm:$0xff] %v1754
  %1771 = vst [vmem:[#allocation3 + $0x3a8] sm:$0xff] %v1755
  %1772 = vst [vmem:[#allocation3 + $0x3b0] sm:$0xff] %v1756
  %1773 = vst [vmem:[#allocation3 + $0x3b8] sm:$0xff] %v1757
  %1774 = vst [vmem:[#allocation3 + $0x3c0] sm:$0xff] %v1758
  %1775 = vst [vmem:[#allocation3 + $0x3c8] sm:$0xff] %v1759
  %1776 = vst [vmem:[#allocation3 + $0x3d0] sm:$0xff] %v1760
  %1777 = vst [vmem:[#allocation3 + $0x3d8] sm:$0xff] %v1761
  %1778 = vst [vmem:[#allocation3 + $0x3e0] sm:$0xff] %v1762
  %1779 = vst [vmem:[#allocation3 + $0x3e8] sm:$0xff] %v1763
  %1780 = vst [vmem:[#allocation3 + $0x3f0] sm:$0xff] %v1764
  %1781 = vst [vmem:[#allocation3 + $0x3f8] sm:$0xff] %v1765
  %1782 = vrot.lane.b32.xlu0 %v1062, 111
  %v1783 = vpop.permute.xlu0 %1782
  %1784 = vrot.lane.b32.xlu0 %v1063, 111
  %v1785 = vpop.permute.xlu0 %1784
  %1786 = vrot.lane.b32.xlu0 %v1064, 111
  %v1787 = vpop.permute.xlu0 %1786
  %1788 = vrot.lane.b32.xlu0 %v1065, 111
  %v1789 = vpop.permute.xlu0 %1788
  %1790 = vrot.lane.b32.xlu0 %v1066, 111
  %v1791 = vpop.permute.xlu0 %1790
  %1792 = vrot.lane.b32.xlu0 %v1067, 111
  %v1793 = vpop.permute.xlu0 %1792
  %1794 = vrot.lane.b32.xlu0 %v1068, 111
  %v1795 = vpop.permute.xlu0 %1794
  %1796 = vrot.lane.b32.xlu0 %v1069, 111
  %v1797 = vpop.permute.xlu0 %1796
  %1798 = vrot.lane.b32.xlu0 %v1070, 111
  %v1799 = vpop.permute.xlu0 %1798
  %1800 = vrot.lane.b32.xlu0 %v1071, 111
  %v1801 = vpop.permute.xlu0 %1800
  %1802 = vrot.lane.b32.xlu0 %v1072, 111
  %v1803 = vpop.permute.xlu0 %1802
  %1804 = vrot.lane.b32.xlu0 %v1073, 111
  %v1805 = vpop.permute.xlu0 %1804
  %1806 = vrot.lane.b32.xlu0 %v1074, 111
  %v1807 = vpop.permute.xlu0 %1806
  %1808 = vrot.lane.b32.xlu0 %v1075, 111
  %v1809 = vpop.permute.xlu0 %1808
  %1810 = vrot.lane.b32.xlu0 %v1076, 111
  %v1811 = vpop.permute.xlu0 %1810
  %1812 = vrot.lane.b32.xlu0 %v1077, 111
  %v1813 = vpop.permute.xlu0 %1812
  %v1814 = vsel %vm609, %v1783, %v1785
  %v1815 = vsel %vm609, %v1785, %v1787
  %v1816 = vsel %vm609, %v1787, %v1789
  %v1817 = vsel %vm609, %v1791, %v1793
  %v1818 = vsel %vm609, %v1793, %v1795
  %v1819 = vsel %vm609, %v1795, %v1797
  %v1820 = vsel %vm609, %v1799, %v1801
  %v1821 = vsel %vm609, %v1801, %v1803
  %v1822 = vsel %vm609, %v1803, %v1805
  %v1823 = vsel %vm609, %v1807, %v1809
  %v1824 = vsel %vm609, %v1809, %v1811
  %v1825 = vsel %vm609, %v1811, %v1813
  %v1842 = vsel %vm609, %v1789, 0.0
  %v1843 = vsel %vm609, %v1797, 0.0
  %v1844 = vsel %vm609, %v1805, 0.0
  %v1845 = vsel %vm609, %v1813, 0.0
  %v1846 = vmul.f32 %v1814, %v621
  %v1847 = vmul.f32 %v1815, %v625
  %v1848 = vmul.f32 %v1816, %v629
  %v1849 = vmul.f32 %v1842, %v633
  %v1850 = vmul.f32 %v1817, %v621
  %v1851 = vmul.f32 %v1818, %v625
  %v1852 = vmul.f32 %v1819, %v629
  %v1853 = vmul.f32 %v1843, %v633
  %v1854 = vmul.f32 %v1820, %v621
  %v1855 = vmul.f32 %v1821, %v625
  %v1856 = vmul.f32 %v1822, %v629
  %v1857 = vmul.f32 %v1844, %v633
  %v1858 = vmul.f32 %v1823, %v621
  %v1859 = vmul.f32 %v1824, %v625
  %v1860 = vmul.f32 %v1825, %v629
  %v1861 = vmul.f32 %v1845, %v633
  %1862 = vst [vmem:[#allocation3 + $0x400] sm:$0xff] %v1846
  %1863 = vst [vmem:[#allocation3 + $0x408] sm:$0xff] %v1847
  %1864 = vst [vmem:[#allocation3 + $0x410] sm:$0xff] %v1848
  %1865 = vst [vmem:[#allocation3 + $0x418] sm:$0xff] %v1849
  %1866 = vst [vmem:[#allocation3 + $0x420] sm:$0xff] %v1850
  %1867 = vst [vmem:[#allocation3 + $0x428] sm:$0xff] %v1851
  %1868 = vst [vmem:[#allocation3 + $0x430] sm:$0xff] %v1852
  %1869 = vst [vmem:[#allocation3 + $0x438] sm:$0xff] %v1853
  %1870 = vst [vmem:[#allocation3 + $0x440] sm:$0xff] %v1854
  %1871 = vst [vmem:[#allocation3 + $0x448] sm:$0xff] %v1855
  %1872 = vst [vmem:[#allocation3 + $0x450] sm:$0xff] %v1856
  %1873 = vst [vmem:[#allocation3 + $0x458] sm:$0xff] %v1857
  %1874 = vst [vmem:[#allocation3 + $0x460] sm:$0xff] %v1858
  %1875 = vst [vmem:[#allocation3 + $0x468] sm:$0xff] %v1859
  %1876 = vst [vmem:[#allocation3 + $0x470] sm:$0xff] %v1860
  %1877 = vst [vmem:[#allocation3 + $0x478] sm:$0xff] %v1861
  %v1878 = vld [vmem:[%s7] sm:$0xff]
  %v1879 = vld [vmem:[%s7 + $0x8] sm:$0xff]
  %v1880 = vld [vmem:[%s7 + $0x10] sm:$0xff]
  %v1881 = vld [vmem:[%s7 + $0x18] sm:$0xff]
  %v1882 = vld [vmem:[%s7 + $0x20] sm:$0xff]
  %v1883 = vld [vmem:[%s7 + $0x28] sm:$0xff]
  %v1884 = vld [vmem:[%s7 + $0x30] sm:$0xff]
  %v1885 = vld [vmem:[%s7 + $0x38] sm:$0xff]
  %v1886 = vld [vmem:[%s7 + $0x40] sm:$0xff]
  %v1887 = vld [vmem:[%s7 + $0x48] sm:$0xff]
  %v1888 = vld [vmem:[%s7 + $0x50] sm:$0xff]
  %v1889 = vld [vmem:[%s7 + $0x58] sm:$0xff]
  %v1890 = vld [vmem:[#allocation3] sm:$0xff]
  %v1891 = vld [vmem:[#allocation3 + $0x8] sm:$0xff]
  %v1892 = vld [vmem:[#allocation3 + $0x10] sm:$0xff]
  %v1893 = vld [vmem:[#allocation3 + $0x18] sm:$0xff]
  %v1894 = vld [vmem:[#allocation3 + $0x20] sm:$0xff]
  %v1895 = vld [vmem:[#allocation3 + $0x28] sm:$0xff]
  %v1896 = vld [vmem:[#allocation3 + $0x30] sm:$0xff]
  %v1897 = vld [vmem:[#allocation3 + $0x38] sm:$0xff]
  %v1898 = vld [vmem:[#allocation3 + $0x40] sm:$0xff]
  %v1899 = vld [vmem:[#allocation3 + $0x48] sm:$0xff]
  %v1900 = vld [vmem:[#allocation3 + $0x50] sm:$0xff]
  %v1901 = vld [vmem:[#allocation3 + $0x58] sm:$0xff]
  %v1902 = vld [vmem:[#allocation3 + $0x60] sm:$0xff]
  %v1903 = vld [vmem:[#allocation3 + $0x68] sm:$0xff]
  %v1904 = vld [vmem:[#allocation3 + $0x70] sm:$0xff]
  %v1905 = vld [vmem:[#allocation3 + $0x78] sm:$0xff]
  %v1906 = vld [vmem:[#allocation3 + $0x80] sm:$0xff]
  %v1907 = vld [vmem:[#allocation3 + $0x88] sm:$0xff]
  %v1908 = vld [vmem:[#allocation3 + $0x90] sm:$0xff]
  %v1909 = vld [vmem:[#allocation3 + $0x98] sm:$0xff]
  %v1910 = vld [vmem:[#allocation3 + $0xa0] sm:$0xff]
  %v1911 = vld [vmem:[#allocation3 + $0xa8] sm:$0xff]
  %v1912 = vld [vmem:[#allocation3 + $0xb0] sm:$0xff]
  %v1913 = vld [vmem:[#allocation3 + $0xb8] sm:$0xff]
  %v1914 = vld [vmem:[#allocation3 + $0xc0] sm:$0xff]
  %v1915 = vld [vmem:[#allocation3 + $0xc8] sm:$0xff]
  %v1916 = vld [vmem:[#allocation3 + $0xd0] sm:$0xff]
  %v1917 = vld [vmem:[#allocation3 + $0xd8] sm:$0xff]
  %v1918 = vld [vmem:[#allocation3 + $0xe0] sm:$0xff]
  %v1919 = vld [vmem:[#allocation3 + $0xe8] sm:$0xff]
  %v1920 = vld [vmem:[#allocation3 + $0xf0] sm:$0xff]
  %v1921 = vld [vmem:[#allocation3 + $0xf8] sm:$0xff]
  %v1922 = vld [vmem:[#allocation3 + $0x100] sm:$0xff]
  %v1923 = vld [vmem:[#allocation3 + $0x108] sm:$0xff]
  %v1924 = vld [vmem:[#allocation3 + $0x110] sm:$0xff]
  %v1925 = vld [vmem:[#allocation3 + $0x118] sm:$0xff]
  %v1926 = vld [vmem:[#allocation3 + $0x120] sm:$0xff]
  %v1927 = vld [vmem:[#allocation3 + $0x128] sm:$0xff]
  %v1928 = vld [vmem:[#allocation3 + $0x130] sm:$0xff]
  %v1929 = vld [vmem:[#allocation3 + $0x138] sm:$0xff]
  %v1930 = vld [vmem:[#allocation3 + $0x140] sm:$0xff]
  %v1931 = vld [vmem:[#allocation3 + $0x148] sm:$0xff]
  %v1932 = vld [vmem:[#allocation3 + $0x150] sm:$0xff]
  %v1933 = vld [vmem:[#allocation3 + $0x158] sm:$0xff]
  %v1934 = vld [vmem:[#allocation3 + $0x160] sm:$0xff]
  %v1935 = vld [vmem:[#allocation3 + $0x168] sm:$0xff]
  %v1936 = vld [vmem:[#allocation3 + $0x170] sm:$0xff]
  %v1937 = vld [vmem:[#allocation3 + $0x178] sm:$0xff]
  %v1938 = vld [vmem:[#allocation3 + $0x180] sm:$0xff]
  %v1939 = vld [vmem:[#allocation3 + $0x188] sm:$0xff]
  %v1940 = vld [vmem:[#allocation3 + $0x190] sm:$0xff]
  %v1941 = vld [vmem:[#allocation3 + $0x198] sm:$0xff]
  %v1942 = vld [vmem:[#allocation3 + $0x1a0] sm:$0xff]
  %v1943 = vld [vmem:[#allocation3 + $0x1a8] sm:$0xff]
  %v1944 = vld [vmem:[#allocation3 + $0x1b0] sm:$0xff]
  %v1945 = vld [vmem:[#allocation3 + $0x1b8] sm:$0xff]
  %v1946 = vld [vmem:[#allocation3 + $0x1c0] sm:$0xff]
  %v1947 = vld [vmem:[#allocation3 + $0x1c8] sm:$0xff]
  %v1948 = vld [vmem:[#allocation3 + $0x1d0] sm:$0xff]
  %v1949 = vld [vmem:[#allocation3 + $0x1d8] sm:$0xff]
  %v1950 = vld [vmem:[#allocation3 + $0x1e0] sm:$0xff]
  %v1951 = vld [vmem:[#allocation3 + $0x1e8] sm:$0xff]
  %v1952 = vld [vmem:[#allocation3 + $0x1f0] sm:$0xff]
  %v1953 = vld [vmem:[#allocation3 + $0x1f8] sm:$0xff]
  %v1954 = vld [vmem:[#allocation3 + $0x200] sm:$0xff]
  %v1955 = vld [vmem:[#allocation3 + $0x208] sm:$0xff]
  %v1956 = vld [vmem:[#allocation3 + $0x210] sm:$0xff]
  %v1957 = vld [vmem:[#allocation3 + $0x218] sm:$0xff]
  %v1958 = vld [vmem:[#allocation3 + $0x220] sm:$0xff]
  %v1959 = vld [vmem:[#allocation3 + $0x228] sm:$0xff]
  %v1960 = vld [vmem:[#allocation3 + $0x230] sm:$0xff]
  %v1961 = vld [vmem:[#allocation3 + $0x238] sm:$0xff]
  %v1962 = vld [vmem:[#allocation3 + $0x240] sm:$0xff]
  %v1963 = vld [vmem:[#allocation3 + $0x248] sm:$0xff]
  %v1964 = vld [vmem:[#allocation3 + $0x250] sm:$0xff]
  %v1965 = vld [vmem:[#allocation3 + $0x258] sm:$0xff]
  %v1966 = vld [vmem:[#allocation3 + $0x260] sm:$0xff]
  %v1967 = vld [vmem:[#allocation3 + $0x268] sm:$0xff]
  %v1968 = vld [vmem:[#allocation3 + $0x270] sm:$0xff]
  %v1969 = vld [vmem:[#allocation3 + $0x278] sm:$0xff]
  %v1970 = vld [vmem:[#allocation3 + $0x280] sm:$0xff]
  %v1971 = vld [vmem:[#allocation3 + $0x288] sm:$0xff]
  %v1972 = vld [vmem:[#allocation3 + $0x290] sm:$0xff]
  %v1973 = vld [vmem:[#allocation3 + $0x298] sm:$0xff]
  %v1974 = vld [vmem:[#allocation3 + $0x2a0] sm:$0xff]
  %v1975 = vld [vmem:[#allocation3 + $0x2a8] sm:$0xff]
  %v1976 = vld [vmem:[#allocation3 + $0x2b0] sm:$0xff]
  %v1977 = vld [vmem:[#allocation3 + $0x2b8] sm:$0xff]
  %v1978 = vld [vmem:[#allocation3 + $0x2c0] sm:$0xff]
  %v1979 = vld [vmem:[#allocation3 + $0x2c8] sm:$0xff]
  %v1980 = vld [vmem:[#allocation3 + $0x2d0] sm:$0xff]
  %v1981 = vld [vmem:[#allocation3 + $0x2d8] sm:$0xff]
  %v1982 = vld [vmem:[#allocation3 + $0x2e0] sm:$0xff]
  %v1983 = vld [vmem:[#allocation3 + $0x2e8] sm:$0xff]
  %v1984 = vld [vmem:[#allocation3 + $0x2f0] sm:$0xff]
  %v1985 = vld [vmem:[#allocation3 + $0x2f8] sm:$0xff]
  %v1986 = vld [vmem:[#allocation3 + $0x300] sm:$0xff]
  %v1987 = vld [vmem:[#allocation3 + $0x308] sm:$0xff]
  %v1988 = vld [vmem:[#allocation3 + $0x310] sm:$0xff]
  %v1989 = vld [vmem:[#allocation3 + $0x318] sm:$0xff]
  %v1990 = vld [vmem:[#allocation3 + $0x320] sm:$0xff]
  %v1991 = vld [vmem:[#allocation3 + $0x328] sm:$0xff]
  %v1992 = vld [vmem:[#allocation3 + $0x330] sm:$0xff]
  %v1993 = vld [vmem:[#allocation3 + $0x338] sm:$0xff]
  %v1994 = vld [vmem:[#allocation3 + $0x340] sm:$0xff]
  %v1995 = vld [vmem:[#allocation3 + $0x348] sm:$0xff]
  %v1996 = vld [vmem:[#allocation3 + $0x350] sm:$0xff]
  %v1997 = vld [vmem:[#allocation3 + $0x358] sm:$0xff]
  %v1998 = vld [vmem:[#allocation3 + $0x360] sm:$0xff]
  %v1999 = vld [vmem:[#allocation3 + $0x368] sm:$0xff]
  %v2000 = vld [vmem:[#allocation3 + $0x370] sm:$0xff]
  %v2001 = vld [vmem:[#allocation3 + $0x378] sm:$0xff]
  %v2002 = vld [vmem:[#allocation3 + $0x380] sm:$0xff]
  %v2003 = vld [vmem:[#allocation3 + $0x388] sm:$0xff]
  %v2004 = vld [vmem:[#allocation3 + $0x390] sm:$0xff]
  %v2005 = vld [vmem:[#allocation3 + $0x398] sm:$0xff]
  %v2006 = vld [vmem:[#allocation3 + $0x3a0] sm:$0xff]
  %v2007 = vld [vmem:[#allocation3 + $0x3a8] sm:$0xff]
  %v2008 = vld [vmem:[#allocation3 + $0x3b0] sm:$0xff]
  %v2009 = vld [vmem:[#allocation3 + $0x3b8] sm:$0xff]
  %v2010 = vld [vmem:[#allocation3 + $0x3c0] sm:$0xff]
  %v2011 = vld [vmem:[#allocation3 + $0x3c8] sm:$0xff]
  %v2012 = vld [vmem:[#allocation3 + $0x3d0] sm:$0xff]
  %v2013 = vld [vmem:[#allocation3 + $0x3d8] sm:$0xff]
  %v2014 = vld [vmem:[#allocation3 + $0x3e0] sm:$0xff]
  %v2015 = vld [vmem:[#allocation3 + $0x3e8] sm:$0xff]
  %v2016 = vld [vmem:[#allocation3 + $0x3f0] sm:$0xff]
  %v2017 = vld [vmem:[#allocation3 + $0x3f8] sm:$0xff]
  %v2018 = vld [vmem:[#allocation3 + $0x400] sm:$0xff]
  %v2019 = vld [vmem:[#allocation3 + $0x408] sm:$0xff]
  %v2020 = vld [vmem:[#allocation3 + $0x410] sm:$0xff]
  %v2021 = vld [vmem:[#allocation3 + $0x418] sm:$0xff]
  %v2022 = vld [vmem:[#allocation3 + $0x420] sm:$0xff]
  %v2023 = vld [vmem:[#allocation3 + $0x428] sm:$0xff]
  %v2024 = vld [vmem:[#allocation3 + $0x430] sm:$0xff]
  %v2025 = vld [vmem:[#allocation3 + $0x438] sm:$0xff]
  %v2026 = vld [vmem:[#allocation3 + $0x440] sm:$0xff]
  %v2027 = vld [vmem:[#allocation3 + $0x448] sm:$0xff]
  %v2028 = vld [vmem:[#allocation3 + $0x450] sm:$0xff]
  %v2029 = vld [vmem:[#allocation3 + $0x458] sm:$0xff]
  %v2030 = vld [vmem:[#allocation3 + $0x460] sm:$0xff]
  %v2031 = vld [vmem:[#allocation3 + $0x468] sm:$0xff]
  %v2032 = vld [vmem:[#allocation3 + $0x470] sm:$0xff]
  %v2033 = vld [vmem:[#allocation3 + $0x478] sm:$0xff]
  %vm2034 = vcmask 261120
  %v2036 = vsel %vm2034, %v1880, 0
  %v2039 = vsel %vm2034, %v1883, 0
  %v2042 = vsel %vm2034, %v1886, 0
  %v2045 = vsel %vm2034, %v1889, 0
  %2047 = vmatprep.subr.mxu0 %v1951
  %2048 = vmatpush1.msra.mxu0 %v1950
  %2049 = vmatprep.subr.mxu0 %v1947
  %2050 = vmatpush1.msra.mxu0 %v1946
  %2051 = vmatprep.subr.mxu0 %v1943
  %2052 = vmatpush1.msra.mxu0 %v1942
  %2053 = vmatprep.subr.mxu0 %v1939
  %2054 = vmatpush1.msra.mxu0 %v1938
  %2055 = vmatprep.subr.mxu0 %v1935
  %2056 = vmatpush1.msra.mxu0 %v1934
  %2057 = vmatprep.subr.mxu0 %v1931
  %2058 = vmatpush1.msra.mxu0 %v1930
  %2059 = vmatprep.subr.mxu0 %v1927
  %2060 = vmatpush1.msra.mxu0 %v1926
  %2061 = vmatprep.subr.mxu0 %v1923
  %2062 = vmatpush1.msra.mxu0 %v1922
  %2063 = vmatprep.subr.mxu0 %v1919
  %2064 = vmatpush1.msra.mxu0 %v1918
  %2065 = vmatprep.subr.mxu0 %v1915
  %2066 = vmatpush1.msra.mxu0 %v1914
  %2067 = vmatprep.subr.mxu0 %v1911
  %2068 = vmatpush1.msra.mxu0 %v1910
  %2069 = vmatprep.subr.mxu0 %v1907
  %2070 = vmatpush1.msra.mxu0 %v1906
  %2071 = vmatprep.subr.mxu0 %v1903
  %2072 = vmatpush1.msra.mxu0 %v1902
  %2073 = vmatprep.subr.mxu0 %v1899
  %2074 = vmatpush1.msra.mxu0 %v1898
  %2075 = vmatprep.subr.mxu0 %v1895
  %2076 = vmatpush1.msra.mxu0 %v1894
  %2077 = vmatprep.subr.mxu0 %v1891
  %2078 = vmatpush1.msra.mxu0 %v1890
  %2079 = vmatprep.subr.mxu0 %v2015
  %2080 = vmatpush2.msra.mxu0 %v2014
  %2081 = vmatprep.subr.mxu0 %v2011
  %2082 = vmatpush2.msra.mxu0 %v2010
  %2083 = vmatprep.subr.mxu0 %v2007
  %2084 = vmatpush2.msra.mxu0 %v2006
  %2085 = vmatprep.subr.mxu0 %v2003
  %2086 = vmatpush2.msra.mxu0 %v2002
  %2087 = vmatprep.subr.mxu0 %v1999
  %2088 = vmatpush2.msra.mxu0 %v1998
  %2089 = vmatprep.subr.mxu0 %v1995
  %2090 = vmatpush2.msra.mxu0 %v1994
  %2091 = vmatprep.subr.mxu0 %v1991
  %2092 = vmatpush2.msra.mxu0 %v1990
  %2093 = vmatprep.subr.mxu0 %v1987
  %2094 = vmatpush2.msra.mxu0 %v1986
  %2095 = vmatprep.subr.mxu0 %v1983
  %2096 = vmatpush2.msra.mxu0 %v1982
  %2097 = vmatprep.subr.mxu0 %v1979
  %2098 = vmatpush2.msra.mxu0 %v1978
  %2099 = vmatprep.subr.mxu0 %v1975
  %2100 = vmatpush2.msra.mxu0 %v1974
  %2101 = vmatprep.subr.mxu0 %v1971
  %2102 = vmatpush2.msra.mxu0 %v1970
  %2103 = vmatprep.subr.mxu0 %v1967
  %2104 = vmatpush2.msra.mxu0 %v1966
  %2105 = vmatprep.subr.mxu0 %v1963
  %2106 = vmatpush2.msra.mxu0 %v1962
  %2107 = vmatprep.subr.mxu0 %v1959
  %2108 = vmatpush2.msra.mxu0 %v1958
  %2109 = vmatprep.subr.mxu0 %v1955
  %2110 = vmatpush2.msra.mxu0 %v1954
  %2111 = vmatprep.mubr.f32.mxu0 %v1879
  %2112 = vmatmul.mubr.f32.gmra.mxu0 %v1878
  %v2113 = vpop.f32.mrf.mxu0
  %v2114 = vadd.f32 0.0, %v2113
  %v2115 = vpop.f32.mrf.mxu0
  %v2116 = vadd.f32 0.0, %v2115
  %2117 = vmatprep.mubr.f32.mxu0 %v1882
  %2118 = vmatmul.mubr.f32.gmra.mxu0 %v1881
  %v2119 = vpop.f32.mrf.mxu0
  %v2120 = vadd.f32 0.0, %v2119
  %v2121 = vpop.f32.mrf.mxu0
  %v2122 = vadd.f32 0.0, %v2121
  %2123 = vmatprep.mubr.f32.mxu0 %v1885
  %2124 = vmatmul.mubr.f32.gmra.mxu0 %v1884
  %v2125 = vpop.f32.mrf.mxu0
  %v2126 = vadd.f32 0.0, %v2125
  %v2127 = vpop.f32.mrf.mxu0
  %v2128 = vadd.f32 0.0, %v2127
  %2129 = vmatprep.mubr.f32.mxu0 %v1888
  %2130 = vmatmul.mubr.f32.gmra.mxu0 %v1887
  %v2131 = vpop.f32.mrf.mxu0
  %v2132 = vadd.f32 0.0, %v2131
  %v2133 = vpop.f32.mrf.mxu0
  %v2134 = vadd.f32 0.0, %v2133
  %2135 = vdwg.mxu0
  %2136 = vmatprep.subr.mxu0 0.0
  %2137 = vmatpush1.msra.mxu0 0.0
  %2138 = vmatprep.subr.mxu0 0.0
  %2139 = vmatpush1.msra.mxu0 0.0
  %2140 = vmatprep.subr.mxu0 0.0
  %2141 = vmatpush1.msra.mxu0 0.0
  %2142 = vmatprep.subr.mxu0 0.0
  %2143 = vmatpush1.msra.mxu0 0.0
  %2144 = vmatprep.subr.mxu0 0.0
  %2145 = vmatpush1.msra.mxu0 0.0
  %2146 = vmatprep.subr.mxu0 0.0
  %2147 = vmatpush1.msra.mxu0 0.0
  %2148 = vmatprep.subr.mxu0 0.0
  %2149 = vmatpush1.msra.mxu0 0.0
  %2150 = vmatprep.subr.mxu0 0.0
  %2151 = vmatpush1.msra.mxu0 0.0
  %2152 = vmatprep.subr.mxu0 0.0
  %2153 = vmatpush1.msra.mxu0 0.0
  %2154 = vmatprep.subr.mxu0 0.0
  %2155 = vmatpush1.msra.mxu0 0.0
  %2156 = vmatprep.subr.mxu0 0.0
  %2157 = vmatpush1.msra.mxu0 0.0
  %2158 = vmatprep.subr.mxu0 0.0
  %2159 = vmatpush1.msra.mxu0 0.0
  %2160 = vmatprep.subr.mxu0 %v2031
  %2161 = vmatpush1.msra.mxu0 %v2030
  %2162 = vmatprep.subr.mxu0 %v2027
  %2163 = vmatpush1.msra.mxu0 %v2026
  %2164 = vmatprep.subr.mxu0 %v2023
  %2165 = vmatpush1.msra.mxu0 %v2022
  %2166 = vmatprep.subr.mxu0 %v2019
  %2167 = vmatpush1.msra.mxu0 %v2018
  %2168 = vmatprep.subr.mxu0 0.0
  %2169 = vmatpush2.msra.mxu0 0.0
  %2170 = vmatprep.subr.mxu0 0.0
  %2171 = vmatpush2.msra.mxu0 0.0
  %2172 = vmatprep.subr.mxu0 0.0
  %2173 = vmatpush2.msra.mxu0 0.0
  %2174 = vmatprep.subr.mxu0 0.0
  %2175 = vmatpush2.msra.mxu0 0.0
  %2176 = vmatprep.subr.mxu0 0.0
  %2177 = vmatpush2.msra.mxu0 0.0
  %2178 = vmatprep.subr.mxu0 0.0
  %2179 = vmatpush2.msra.mxu0 0.0
  %2180 = vmatprep.subr.mxu0 0.0
  %2181 = vmatpush2.msra.mxu0 0.0
  %2182 = vmatprep.subr.mxu0 0.0
  %2183 = vmatpush2.msra.mxu0 0.0
  %2184 = vmatprep.subr.mxu0 0.0
  %2185 = vmatpush2.msra.mxu0 0.0
  %2186 = vmatprep.subr.mxu0 0.0
  %2187 = vmatpush2.msra.mxu0 0.0
  %2188 = vmatprep.subr.mxu0 0.0
  %2189 = vmatpush2.msra.mxu0 0.0
  %2190 = vmatprep.subr.mxu0 0.0
  %2191 = vmatpush2.msra.mxu0 0.0
  %2192 = vmatprep.subr.mxu0 0.0
  %2193 = vmatpush2.msra.mxu0 0.0
  %2194 = vmatprep.subr.mxu0 0.0
  %2195 = vmatpush2.msra.mxu0 0.0
  %2196 = vmatprep.subr.mxu0 0.0
  %2197 = vmatpush2.msra.mxu0 0.0
  %2198 = vmatprep.subr.mxu0 0.0
  %2199 = vmatpush2.msra.mxu0 0.0
  %2200 = vmatprep.mubr.f32.mxu0 0.0
  %2201 = vmatmul.mubr.f32.gmra.mxu0 %v2036
  %v2202 = vpop.f32.mrf.mxu0
  %v2203 = vadd.f32 %v2114, %v2202
  %v2204 = vpop.f32.mrf.mxu0
  %v2205 = vadd.f32 %v2116, %v2204
  %2206 = vmatprep.mubr.f32.mxu0 0.0
  %2207 = vmatmul.mubr.f32.gmra.mxu0 %v2039
  %v2208 = vpop.f32.mrf.mxu0
  %v2209 = vadd.f32 %v2120, %v2208
  %v2210 = vpop.f32.mrf.mxu0
  %v2211 = vadd.f32 %v2122, %v2210
  %2212 = vmatprep.mubr.f32.mxu0 0.0
  %2213 = vmatmul.mubr.f32.gmra.mxu0 %v2042
  %v2214 = vpop.f32.mrf.mxu0
  %v2215 = vadd.f32 %v2126, %v2214
  %v2216 = vpop.f32.mrf.mxu0
  %v2217 = vadd.f32 %v2128, %v2216
  %2218 = vmatprep.mubr.f32.mxu0 0.0
  %2219 = vmatmul.mubr.f32.gmra.mxu0 %v2045
  %v2220 = vpop.f32.mrf.mxu0
  %v2221 = vadd.f32 %v2132, %v2220
  %v2222 = vpop.f32.mrf.mxu0
  %v2223 = vadd.f32 %v2134, %v2222
  %2224 = vdwg.mxu0
  %2225 = vmatprep.subr.mxu0 %v1953
  %2226 = vmatpush1.msra.mxu0 %v1952
  %2227 = vmatprep.subr.mxu0 %v1949
  %2228 = vmatpush1.msra.mxu0 %v1948
  %2229 = vmatprep.subr.mxu0 %v1945
  %2230 = vmatpush1.msra.mxu0 %v1944
  %2231 = vmatprep.subr.mxu0 %v1941
  %2232 = vmatpush1.msra.mxu0 %v1940
  %2233 = vmatprep.subr.mxu0 %v1937
  %2234 = vmatpush1.msra.mxu0 %v1936
  %2235 = vmatprep.subr.mxu0 %v1933
  %2236 = vmatpush1.msra.mxu0 %v1932
  %2237 = vmatprep.subr.mxu0 %v1929
  %2238 = vmatpush1.msra.mxu0 %v1928
  %2239 = vmatprep.subr.mxu0 %v1925
  %2240 = vmatpush1.msra.mxu0 %v1924
  %2241 = vmatprep.subr.mxu0 %v1921
  %2242 = vmatpush1.msra.mxu0 %v1920
  %2243 = vmatprep.subr.mxu0 %v1917
  %2244 = vmatpush1.msra.mxu0 %v1916
  %2245 = vmatprep.subr.mxu0 %v1913
  %2246 = vmatpush1.msra.mxu0 %v1912
  %2247 = vmatprep.subr.mxu0 %v1909
  %2248 = vmatpush1.msra.mxu0 %v1908
  %2249 = vmatprep.subr.mxu0 %v1905
  %2250 = vmatpush1.msra.mxu0 %v1904
  %2251 = vmatprep.subr.mxu0 %v1901
  %2252 = vmatpush1.msra.mxu0 %v1900
  %2253 = vmatprep.subr.mxu0 %v1897
  %2254 = vmatpush1.msra.mxu0 %v1896
  %2255 = vmatprep.subr.mxu0 %v1893
  %2256 = vmatpush1.msra.mxu0 %v1892
  %2257 = vmatprep.subr.mxu0 %v2017
  %2258 = vmatpush2.msra.mxu0 %v2016
  %2259 = vmatprep.subr.mxu0 %v2013
  %2260 = vmatpush2.msra.mxu0 %v2012
  %2261 = vmatprep.subr.mxu0 %v2009
  %2262 = vmatpush2.msra.mxu0 %v2008
  %2263 = vmatprep.subr.mxu0 %v2005
  %2264 = vmatpush2.msra.mxu0 %v2004
  %2265 = vmatprep.subr.mxu0 %v2001
  %2266 = vmatpush2.msra.mxu0 %v2000
  %2267 = vmatprep.subr.mxu0 %v1997
  %2268 = vmatpush2.msra.mxu0 %v1996
  %2269 = vmatprep.subr.mxu0 %v1993
  %2270 = vmatpush2.msra.mxu0 %v1992
  %2271 = vmatprep.subr.mxu0 %v1989
  %2272 = vmatpush2.msra.mxu0 %v1988
  %2273 = vmatprep.subr.mxu0 %v1985
  %2274 = vmatpush2.msra.mxu0 %v1984
  %2275 = vmatprep.subr.mxu0 %v1981
  %2276 = vmatpush2.msra.mxu0 %v1980
  %2277 = vmatprep.subr.mxu0 %v1977
  %2278 = vmatpush2.msra.mxu0 %v1976
  %2279 = vmatprep.subr.mxu0 %v1973
  %2280 = vmatpush2.msra.mxu0 %v1972
  %2281 = vmatprep.subr.mxu0 %v1969
  %2282 = vmatpush2.msra.mxu0 %v1968
  %2283 = vmatprep.subr.mxu0 %v1965
  %2284 = vmatpush2.msra.mxu0 %v1964
  %2285 = vmatprep.subr.mxu0 %v1961
  %2286 = vmatpush2.msra.mxu0 %v1960
  %2287 = vmatprep.subr.mxu0 %v1957
  %2288 = vmatpush2.msra.mxu0 %v1956
  %2289 = vmatprep.mubr.f32.mxu0 %v1879
  %2290 = vmatmul.mubr.f32.gmra.mxu0 %v1878
  %v2291 = vpop.f32.mrf.mxu0
  %v2292 = vadd.f32 0.0, %v2291
  %v2293 = vpop.f32.mrf.mxu0
  %v2294 = vadd.f32 0.0, %v2293
  %2295 = vmatprep.mubr.f32.mxu0 %v1882
  %2296 = vmatmul.mubr.f32.gmra.mxu0 %v1881
  %v2297 = vpop.f32.mrf.mxu0
  %v2298 = vadd.f32 0.0, %v2297
  %v2299 = vpop.f32.mrf.mxu0
  %v2300 = vadd.f32 0.0, %v2299
  %2301 = vmatprep.mubr.f32.mxu0 %v1885
  %2302 = vmatmul.mubr.f32.gmra.mxu0 %v1884
  %v2303 = vpop.f32.mrf.mxu0
  %v2304 = vadd.f32 0.0, %v2303
  %v2305 = vpop.f32.mrf.mxu0
  %v2306 = vadd.f32 0.0, %v2305
  %2307 = vmatprep.mubr.f32.mxu0 %v1888
  %2308 = vmatmul.mubr.f32.gmra.mxu0 %v1887
  %v2309 = vpop.f32.mrf.mxu0
  %v2310 = vadd.f32 0.0, %v2309
  %v2311 = vpop.f32.mrf.mxu0
  %v2312 = vadd.f32 0.0, %v2311
  %2313 = vdwg.mxu0
  %2314 = vmatprep.subr.mxu0 0.0
  %2315 = vmatpush1.msra.mxu0 0.0
  %2316 = vmatprep.subr.mxu0 0.0
  %2317 = vmatpush1.msra.mxu0 0.0
  %2318 = vmatprep.subr.mxu0 0.0
  %2319 = vmatpush1.msra.mxu0 0.0
  %2320 = vmatprep.subr.mxu0 0.0
  %2321 = vmatpush1.msra.mxu0 0.0
  %2322 = vmatprep.subr.mxu0 0.0
  %2323 = vmatpush1.msra.mxu0 0.0
  %2324 = vmatprep.subr.mxu0 0.0
  %2325 = vmatpush1.msra.mxu0 0.0
  %2326 = vmatprep.subr.mxu0 0.0
  %2327 = vmatpush1.msra.mxu0 0.0
  %2328 = vmatprep.subr.mxu0 0.0
  %2329 = vmatpush1.msra.mxu0 0.0
  %2330 = vmatprep.subr.mxu0 0.0
  %2331 = vmatpush1.msra.mxu0 0.0
  %2332 = vmatprep.subr.mxu0 0.0
  %2333 = vmatpush1.msra.mxu0 0.0
  %2334 = vmatprep.subr.mxu0 0.0
  %2335 = vmatpush1.msra.mxu0 0.0
  %2336 = vmatprep.subr.mxu0 0.0
  %2337 = vmatpush1.msra.mxu0 0.0
  %2338 = vmatprep.subr.mxu0 %v2033
  %2339 = vmatpush1.msra.mxu0 %v2032
  %2340 = vmatprep.subr.mxu0 %v2029
  %2341 = vmatpush1.msra.mxu0 %v2028
  %2342 = vmatprep.subr.mxu0 %v2025
  %2343 = vmatpush1.msra.mxu0 %v2024
  %2344 = vmatprep.subr.mxu0 %v2021
  %2345 = vmatpush1.msra.mxu0 %v2020
  %2346 = vmatprep.subr.mxu0 0.0
  %2347 = vmatpush2.msra.mxu0 0.0
  %2348 = vmatprep.subr.mxu0 0.0
  %2349 = vmatpush2.msra.mxu0 0.0
  %2350 = vmatprep.subr.mxu0 0.0
  %2351 = vmatpush2.msra.mxu0 0.0
  %2352 = vmatprep.subr.mxu0 0.0
  %2353 = vmatpush2.msra.mxu0 0.0
  %2354 = vmatprep.subr.mxu0 0.0
  %2355 = vmatpush2.msra.mxu0 0.0
  %2356 = vmatprep.subr.mxu0 0.0
  %2357 = vmatpush2.msra.mxu0 0.0
  %2358 = vmatprep.subr.mxu0 0.0
  %2359 = vmatpush2.msra.mxu0 0.0
  %2360 = vmatprep.subr.mxu0 0.0
  %2361 = vmatpush2.msra.mxu0 0.0
  %2362 = vmatprep.subr.mxu0 0.0
  %2363 = vmatpush2.msra.mxu0 0.0
  %2364 = vmatprep.subr.mxu0 0.0
  %2365 = vmatpush2.msra.mxu0 0.0
  %2366 = vmatprep.subr.mxu0 0.0
  %2367 = vmatpush2.msra.mxu0 0.0
  %2368 = vmatprep.subr.mxu0 0.0
  %2369 = vmatpush2.msra.mxu0 0.0
  %2370 = vmatprep.subr.mxu0 0.0
  %2371 = vmatpush2.msra.mxu0 0.0
  %2372 = vmatprep.subr.mxu0 0.0
  %2373 = vmatpush2.msra.mxu0 0.0
  %2374 = vmatprep.subr.mxu0 0.0
  %2375 = vmatpush2.msra.mxu0 0.0
  %2376 = vmatprep.subr.mxu0 0.0
  %2377 = vmatpush2.msra.mxu0 0.0
  %2378 = vmatprep.mubr.f32.mxu0 0.0
  %2379 = vmatmul.mubr.f32.gmra.mxu0 %v2036
  %v2380 = vpop.f32.mrf.mxu0
  %v2381 = vadd.f32 %v2292, %v2380
  %v2382 = vpop.f32.mrf.mxu0
  %v2383 = vadd.f32 %v2294, %v2382
  %2384 = vmatprep.mubr.f32.mxu0 0.0
  %2385 = vmatmul.mubr.f32.gmra.mxu0 %v2039
  %v2386 = vpop.f32.mrf.mxu0
  %v2387 = vadd.f32 %v2298, %v2386
  %v2388 = vpop.f32.mrf.mxu0
  %v2389 = vadd.f32 %v2300, %v2388
  %2390 = vmatprep.mubr.f32.mxu0 0.0
  %2391 = vmatmul.mubr.f32.gmra.mxu0 %v2042
  %v2392 = vpop.f32.mrf.mxu0
  %v2393 = vadd.f32 %v2304, %v2392
  %v2394 = vpop.f32.mrf.mxu0
  %v2395 = vadd.f32 %v2306, %v2394
  %2396 = vmatprep.mubr.f32.mxu0 0.0
  %2397 = vmatmul.mubr.f32.gmra.mxu0 %v2045
  %v2398 = vpop.f32.mrf.mxu0
  %v2399 = vadd.f32 %v2310, %v2398
  %v2400 = vpop.f32.mrf.mxu0
  %v2401 = vadd.f32 %v2312, %v2400
  %2402 = vdwg.mxu0
  %v2403 = vld [vmem:[%s8] sm:$0xff]
  %v2404 = vld [vmem:[%s8 + $0x8] sm:$0xff]
  %v2405 = vld [vmem:[%s8 + $0x10] sm:$0xff]
  %v2406 = vld [vmem:[%s8 + $0x18] sm:$0xff]
  %v2407 = vld [vmem:[%s9] sm:$0xff]
  %v2408 = vld [vmem:[%s9 + $0x8] sm:$0xff]
  %v2409 = vld [vmem:[%s9 + $0x10] sm:$0xff]
  %v2410 = vld [vmem:[%s9 + $0x18] sm:$0xff]
  %v2411 = vadd.f32 %v2203, %v2205
  %v2412 = vadd.f32 %v2411, %v2381
  %v2413 = vadd.f32 %v2412, %v2383
  %2414 = vadd.xlane.f32.xlu0 %v2413
  %v2415 = vpop.xlane.xlu0 %2414
  %v2416 = vadd.f32 %v2209, %v2211
  %v2417 = vadd.f32 %v2416, %v2387
  %v2418 = vadd.f32 %v2417, %v2389
  %2419 = vadd.xlane.f32.xlu0 %v2418
  %v2420 = vpop.xlane.xlu0 %2419
  %v2421 = vadd.f32 %v2215, %v2217
  %v2422 = vadd.f32 %v2421, %v2393
  %v2423 = vadd.f32 %v2422, %v2395
  %2424 = vadd.xlane.f32.xlu0 %v2423
  %v2425 = vpop.xlane.xlu0 %2424
  %v2426 = vadd.f32 %v2221, %v2223
  %v2427 = vadd.f32 %v2426, %v2399
  %v2428 = vadd.f32 %v2427, %v2401
  %2429 = vadd.xlane.f32.xlu0 %v2428
  %v2430 = vpop.xlane.xlu0 %2429
  %v2431 = vmul.f32 %v2415, 0.001953125
  %v2432 = vmul.f32 %v2420, 0.001953125
  %v2433 = vmul.f32 %v2425, 0.001953125
  %v2434 = vmul.f32 %v2430, 0.001953125
  %v2435 = vmul.f32 %v2203, %v2203
  %v2436 = vmul.f32 %v2205, %v2205
  %v2437 = vmul.f32 %v2381, %v2381
  %v2438 = vmul.f32 %v2383, %v2383
  %v2439 = vmul.f32 %v2209, %v2209
  %v2440 = vmul.f32 %v2211, %v2211
  %v2441 = vmul.f32 %v2387, %v2387
  %v2442 = vmul.f32 %v2389, %v2389
  %v2443 = vmul.f32 %v2215, %v2215
  %v2444 = vmul.f32 %v2217, %v2217
  %v2445 = vmul.f32 %v2393, %v2393
  %v2446 = vmul.f32 %v2395, %v2395
  %v2447 = vmul.f32 %v2221, %v2221
  %v2448 = vmul.f32 %v2223, %v2223
  %v2449 = vmul.f32 %v2399, %v2399
  %v2450 = vmul.f32 %v2401, %v2401
  %v2451 = vadd.f32 %v2435, %v2436
  %v2452 = vadd.f32 %v2451, %v2437
  %v2453 = vadd.f32 %v2452, %v2438
  %2454 = vadd.xlane.f32.xlu0 %v2453
  %v2455 = vpop.xlane.xlu0 %2454
  %v2456 = vadd.f32 %v2439, %v2440
  %v2457 = vadd.f32 %v2456, %v2441
  %v2458 = vadd.f32 %v2457, %v2442
  %2459 = vadd.xlane.f32.xlu0 %v2458
  %v2460 = vpop.xlane.xlu0 %2459
  %v2461 = vadd.f32 %v2443, %v2444
  %v2462 = vadd.f32 %v2461, %v2445
  %v2463 = vadd.f32 %v2462, %v2446
  %2464 = vadd.xlane.f32.xlu0 %v2463
  %v2465 = vpop.xlane.xlu0 %2464
  %v2466 = vadd.f32 %v2447, %v2448
  %v2467 = vadd.f32 %v2466, %v2449
  %v2468 = vadd.f32 %v2467, %v2450
  %2469 = vadd.xlane.f32.xlu0 %v2468
  %v2470 = vpop.xlane.xlu0 %2469
  %v2471 = vmul.f32 %v2455, 0.001953125
  %v2472 = vmul.f32 %v2460, 0.001953125
  %v2473 = vmul.f32 %v2465, 0.001953125
  %v2474 = vmul.f32 %v2470, 0.001953125
  %v2475 = vmul.f32 %v2431, %v2431
  %v2476 = vmul.f32 %v2432, %v2432
  %v2477 = vmul.f32 %v2433, %v2433
  %v2478 = vmul.f32 %v2434, %v2434
  %v2479 = vsub.f32 %v2471, %v2475
  %v2480 = vsub.f32 %v2472, %v2476
  %v2481 = vsub.f32 %v2473, %v2477
  %v2482 = vsub.f32 %v2474, %v2478
  %v2483 = vsub.f32 %v2203, %v2431
  %v2484 = vsub.f32 %v2205, %v2431
  %v2485 = vsub.f32 %v2381, %v2431
  %v2486 = vsub.f32 %v2383, %v2431
  %v2487 = vsub.f32 %v2209, %v2432
  %v2488 = vsub.f32 %v2211, %v2432
  %v2489 = vsub.f32 %v2387, %v2432
  %v2490 = vsub.f32 %v2389, %v2432
  %v2491 = vsub.f32 %v2215, %v2433
  %v2492 = vsub.f32 %v2217, %v2433
  %v2493 = vsub.f32 %v2393, %v2433
  %v2494 = vsub.f32 %v2395, %v2433
  %v2495 = vsub.f32 %v2221, %v2434
  %v2496 = vsub.f32 %v2223, %v2434
  %v2497 = vsub.f32 %v2399, %v2434
  %v2498 = vsub.f32 %v2401, %v2434
  %v2499 = vadd.f32 %v2479, 1e-05
  %v2500 = vadd.f32 %v2480, 1e-05
  %v2501 = vadd.f32 %v2481, 1e-05
  %v2502 = vadd.f32 %v2482, 1e-05
  %v2503 = vrsqrt.pop %v2499
  %v2504 = vrsqrt.pop %v2500
  %v2505 = vrsqrt.pop %v2501
  %v2506 = vrsqrt.pop %v2502
  %v2507 = vmul.f32 %v2483, %v2503
  %v2508 = vmul.f32 %v2484, %v2503
  %v2509 = vmul.f32 %v2485, %v2503
  %v2510 = vmul.f32 %v2486, %v2503
  %v2511 = vmul.f32 %v2487, %v2504
  %v2512 = vmul.f32 %v2488, %v2504
  %v2513 = vmul.f32 %v2489, %v2504
  %v2514 = vmul.f32 %v2490, %v2504
  %v2515 = vmul.f32 %v2491, %v2505
  %v2516 = vmul.f32 %v2492, %v2505
  %v2517 = vmul.f32 %v2493, %v2505
  %v2518 = vmul.f32 %v2494, %v2505
  %v2519 = vmul.f32 %v2495, %v2506
  %v2520 = vmul.f32 %v2496, %v2506
  %v2521 = vmul.f32 %v2497, %v2506
  %v2522 = vmul.f32 %v2498, %v2506
  %2524 = vset.pattern.permute.xlu0 0
  %2525 = vperm.xlu0 %2524, %v2403
  %v2526 = vpop.permute.xlu0 %2525
  %2529 = vset.pattern.permute.xlu0 0
  %2530 = vperm.xlu0 %2529, %v2404
  %v2531 = vpop.permute.xlu0 %2530
  %2534 = vset.pattern.permute.xlu0 0
  %2535 = vperm.xlu0 %2534, %v2405
  %v2536 = vpop.permute.xlu0 %2535
  %2539 = vset.pattern.permute.xlu0 0
  %2540 = vperm.xlu0 %2539, %v2406
  %v2541 = vpop.permute.xlu0 %2540
  %v2543 = vmul.f32 %v2507, %v2526
  %v2544 = vmul.f32 %v2508, %v2526
  %v2545 = vmul.f32 %v2509, %v2526
  %v2546 = vmul.f32 %v2510, %v2526
  %v2547 = vmul.f32 %v2511, %v2531
  %v2548 = vmul.f32 %v2512, %v2531
  %v2549 = vmul.f32 %v2513, %v2531
  %v2550 = vmul.f32 %v2514, %v2531
  %v2551 = vmul.f32 %v2515, %v2536
  %v2552 = vmul.f32 %v2516, %v2536
  %v2553 = vmul.f32 %v2517, %v2536
  %v2554 = vmul.f32 %v2518, %v2536
  %v2555 = vmul.f32 %v2519, %v2541
  %v2556 = vmul.f32 %v2520, %v2541
  %v2557 = vmul.f32 %v2521, %v2541
  %v2558 = vmul.f32 %v2522, %v2541
  %2560 = vset.pattern.permute.xlu0 0
  %2561 = vperm.xlu0 %2560, %v2407
  %v2562 = vpop.permute.xlu0 %2561
  %2565 = vset.pattern.permute.xlu0 0
  %2566 = vperm.xlu0 %2565, %v2408
  %v2567 = vpop.permute.xlu0 %2566
  %2570 = vset.pattern.permute.xlu0 0
  %2571 = vperm.xlu0 %2570, %v2409
  %v2572 = vpop.permute.xlu0 %2571
  %2575 = vset.pattern.permute.xlu0 0
  %2576 = vperm.xlu0 %2575, %v2410
  %v2577 = vpop.permute.xlu0 %2576
  %v2579 = vadd.f32 %v2543, %v2562
  %v2580 = vadd.f32 %v2544, %v2562
  %v2581 = vadd.f32 %v2545, %v2562
  %v2582 = vadd.f32 %v2546, %v2562
  %v2583 = vadd.f32 %v2547, %v2567
  %v2584 = vadd.f32 %v2548, %v2567
  %v2585 = vadd.f32 %v2549, %v2567
  %v2586 = vadd.f32 %v2550, %v2567
  %v2587 = vadd.f32 %v2551, %v2572
  %v2588 = vadd.f32 %v2552, %v2572
  %v2589 = vadd.f32 %v2553, %v2572
  %v2590 = vadd.f32 %v2554, %v2572
  %v2591 = vadd.f32 %v2555, %v2577
  %v2592 = vadd.f32 %v2556, %v2577
  %v2593 = vadd.f32 %v2557, %v2577
  %v2594 = vadd.f32 %v2558, %v2577
  %v2595 = vmax.f32 %v2579, 0.0
  %v2596 = vmax.f32 %v2580, 0.0
  %v2597 = vmax.f32 %v2581, 0.0
  %v2598 = vmax.f32 %v2582, 0.0
  %v2599 = vmax.f32 %v2583, 0.0
  %v2600 = vmax.f32 %v2584, 0.0
  %v2601 = vmax.f32 %v2585, 0.0
  %v2602 = vmax.f32 %v2586, 0.0
  %v2603 = vmax.f32 %v2587, 0.0
  %v2604 = vmax.f32 %v2588, 0.0
  %v2605 = vmax.f32 %v2589, 0.0
  %v2606 = vmax.f32 %v2590, 0.0
  %v2607 = vmax.f32 %v2591, 0.0
  %v2608 = vmax.f32 %v2592, 0.0
  %v2609 = vmax.f32 %v2593, 0.0
  %v2610 = vmax.f32 %v2594, 0.0
  %2611 = vst [vmem:[%s10] sm:$0xff] %v2595
  %2612 = vst [vmem:[%s10 + $0x8] sm:$0xff] %v2596
  %2613 = vst [vmem:[%s10 + $0x10] sm:$0xff] %v2597
  %2614 = vst [vmem:[%s10 + $0x18] sm:$0xff] %v2598
  %2615 = vst [vmem:[%s10 + $0x20] sm:$0xff] %v2599
  %2616 = vst [vmem:[%s10 + $0x28] sm:$0xff] %v2600
  %2617 = vst [vmem:[%s10 + $0x30] sm:$0xff] %v2601
  %2618 = vst [vmem:[%s10 + $0x38] sm:$0xff] %v2602
  %2619 = vst [vmem:[%s10 + $0x40] sm:$0xff] %v2603
  %2620 = vst [vmem:[%s10 + $0x48] sm:$0xff] %v2604
  %2621 = vst [vmem:[%s10 + $0x50] sm:$0xff] %v2605
  %2622 = vst [vmem:[%s10 + $0x58] sm:$0xff] %v2606
  %2623 = vst [vmem:[%s10 + $0x60] sm:$0xff] %v2607
  %2624 = vst [vmem:[%s10 + $0x68] sm:$0xff] %v2608
  %2625 = vst [vmem:[%s10 + $0x70] sm:$0xff] %v2609
  %2626 = vst [vmem:[%s10 + $0x78] sm:$0xff] %v2610
  // Predicated region
  $region42: #{simple_upsampling_block.1} parent=0 // pred_check
    _
  $region43: #{simple_upsampling_block.1} parent=0 // pred_check_branch
    %2628 = sbr.rel (0) target = $region45
  $region44: #{simple_upsampling_block.1} parent=0 // pred_region
    _
  $region45: #{simple_upsampling_block.1} parent=0 // pred_fallthru
    _
  // Predicated region
  $region46: #{simple_upsampling_block.1} parent=0 // pred_check
    _
  $region47: #{simple_upsampling_block.1} parent=0 // pred_check_branch
    %2630 = sbr.rel (0) target = $region49
  $region48: #{simple_upsampling_block.1} parent=0 // pred_region
    _
  $region49: #{simple_upsampling_block.1} parent=0 // pred_fallthru
    _

</llo_original>
